<compile_context>
chip_gen: v7x
topology: tpu7x:2x2x1
jax: 0.10.0
libtpu: 0.0.40
codegen_flags: <defaults>
</compile_context>

<pallas_src>
import math
import functools

import jax
import jax.numpy as jnp
from jax import lax
from jax.experimental import pallas as pl
from jax.experimental.pallas import tpu as pltpu


def _round_up(n, m):
    return ((n + m - 1) // m) * m


def region_pred_kernel(x_ref, w1_ref, b1_ref, g_ref, beta_ref, w2_ref, b2_ref,
                       o_ref, *, compute_dtype, approximate_gelu):
    # x_ref: (tm, D_in)   w1_ref: (D_in, H)   b1/g/beta: (1, H)  [f32]
    # w2_ref: (H, 128)    b2_ref: (1, 128)    o_ref: (tm, 128)   (lane-dense, padded)
    # x/w1/w2 arrive already in compute_dtype (pre-cast in the wrapper).
    h = jnp.dot(x_ref[...], w1_ref[...], preferred_element_type=jnp.float32)
    h = h + b1_ref[...]

    if approximate_gelu:
        # tanh gelu rides the EUP slot; small numerics deviation vs exact erf.
        c = math.sqrt(2.0 / math.pi)
        h = 0.5 * h * (1.0 + jnp.tanh(c * (h + 0.044715 * h * h * h)))
    else:
        # Exact erf gelu — matches the PyTorch module bit-for-bit semantics.
        h = h * 0.5 * (1.0 + lax.erf(h * (1.0 / math.sqrt(2.0))))

    # BertLayerNorm over last dim, eps=1e-12.
    # Fused single-pass stats (E[h], E[h^2]) + rsqrt on the EUP slot.
    mu = jnp.mean(h, axis=-1, keepdims=True)
    ms = jnp.mean(h * h, axis=-1, keepdims=True)
    var = ms - mu * mu
    hn = (h - mu) * lax.rsqrt(var + 1e-12)
    hn = hn * g_ref[...] + beta_ref[...]

    # decoder (zero-padded to 128 lanes) + sigmoid; full-lane unmasked store.
    if compute_dtype is not None:
        hn = hn.astype(compute_dtype)          # w2 already pre-cast in wrapper
    out = jnp.dot(hn, w2_ref[...], preferred_element_type=jnp.float32)
    out = out + b2_ref[...]
    o_ref[...] = jax.nn.sigmoid(out).astype(o_ref.dtype)


def region_pred(x, w1, b1, gamma, beta, w2, b2, *, tm=1024,
                compute_dtype=None, approximate_gelu=False):
    """x: [B, S, D_in] -> [B, S, 4].

    tm:             rows per grid step (sweep 512-2048; shrunk for tiny inputs).
    compute_dtype:  e.g. jnp.bfloat16 — casts x/w1/w2 in the wrapper (bf16 in HBM,
                    halving the dominant x DMA) and runs BOTH matmuls on the MXU
                    in bf16 with f32 accumulation.  Recommended on v5e/v6e/v7x.
    approximate_gelu: use tanh gelu (EUP) instead of exact erf if VALU-bound.
    """
    B, S, D_in = x.shape
    H = w1.shape[1]
    n_out = w2.shape[1]          # 4
    M = B * S
    out_dtype = x.dtype

    # Row tiling: multiple of 8 sublanes; tail rows zero-padded (any B*S works).
    tm_eff = min(_round_up(tm, 8), _round_up(M, 8))
    M_pad = _round_up(M, tm_eff)

    x2 = x.reshape(M, D_in)
    if compute_dtype is not None:
        # Cast in the wrapper so the narrow dtype is what lives in HBM; an
        # in-kernel cast would happen after the f32 DMA and only help the MXU.
        x2 = x2.astype(compute_dtype)
        w1 = w1.astype(compute_dtype)
    if M_pad != M:
        x2 = jnp.pad(x2, ((0, M_pad - M), (0, 0)))   # padded rows sliced off below

    # Lane-dense decoder: pad (H, 4) -> (H, 128) with zeros so the output block is
    # a full 128-lane slab (unmasked stores). Extra sigmoid(0)=0.5 columns sliced.
    out_w = _round_up(max(n_out, 128), 128)
    w2_dtype = compute_dtype if compute_dtype is not None else w2.dtype
    w2p = jnp.zeros((H, out_w), dtype=w2_dtype).at[:, :n_out].set(w2.astype(w2_dtype))
    b2p = jnp.zeros((1, out_w), dtype=jnp.float32).at[0, :n_out].set(
        b2.astype(jnp.float32))

    # Small per-feature vectors stay f32 for accuracy (tiny DMA cost).
    b1_ = b1.reshape(1, H).astype(jnp.float32)
    g_ = gamma.reshape(1, H).astype(jnp.float32)
    be_ = beta.reshape(1, H).astype(jnp.float32)

    # VMEM budget from the actual working set (+8 MiB headroom), capped at 48 MiB
    # so v7x (64 MiB physical per-TC VMEM) keeps compiler scratch headroom.
    xb = jnp.dtype(x2.dtype).itemsize
    wb = jnp.dtype(w2p.dtype).itemsize
    ob = jnp.dtype(out_dtype).itemsize
    budget = (2 * tm_eff * D_in * xb            # double-buffered x tiles
              + 2 * tm_eff * out_w * ob         # double-buffered out tiles
              + 2 * D_in * H * wb               # dense weight (resident)
              + 2 * H * out_w * wb              # decoder weight (padded)
              + 8 * (3 * H + out_w) * 4         # small vectors
              + 4 * tm_eff * H * 4              # h + gelu/LN f32 temporaries
              + (8 << 20))                      # headroom
    vmem_limit = int(max(32 << 20, min(budget, 48 << 20)))

    grid = (M_pad // tm_eff,)
    fixed = lambda i: (0, 0)

    kernel = functools.partial(region_pred_kernel,
                               compute_dtype=compute_dtype,
                               approximate_gelu=approximate_gelu)

    out = pl.pallas_call(
        kernel,
        out_shape=jax.ShapeDtypeStruct((M_pad, out_w), out_dtype),
        grid_spec=pltpu.PrefetchScalarGridSpec(
            num_scalar_prefetch=0,
            grid=grid,
            in_specs=[
                pl.BlockSpec((tm_eff, D_in), lambda i: (i, 0)),  # x rows (tiled)
                pl.BlockSpec((D_in, H), fixed),                  # dense weight (resident)
                pl.BlockSpec((1, H), fixed),                     # dense bias
                pl.BlockSpec((1, H), fixed),                     # LN gamma
                pl.BlockSpec((1, H), fixed),                     # LN beta
                pl.BlockSpec((H, out_w), fixed),                 # decoder weight (padded)
                pl.BlockSpec((1, out_w), fixed),                 # decoder bias (padded)
            ],
            out_specs=pl.BlockSpec((tm_eff, out_w), lambda i: (i, 0)),
        ),
        compiler_params=pltpu.CompilerParams(
            # Row tiles are independent -> shardable across the 2 TCs on v7x.
            dimension_semantics=("parallel",),
            vmem_limit_bytes=vmem_limit,
        ),
    )(x2, w1, b1_, g_, be_, w2p, b2p)

    return out[:M, :n_out].reshape(B, S, n_out)


def region_pred_ref(x, w1, b1, gamma, beta, w2, b2):
    h = jnp.einsum("bsd,dh->bsh", x.astype(jnp.float32), w1) + b1
    h = h * 0.5 * (1.0 + lax.erf(h / math.sqrt(2.0)))
    mu = jnp.mean(h, axis=-1, keepdims=True)
    var = jnp.mean((h - mu) ** 2, axis=-1, keepdims=True)
    hn = (h - mu) / jnp.sqrt(var + 1e-12)
    hn = hn * gamma + beta
    out = jnp.einsum("bsh,ho->bso", hn, w2) + b2
    return jax.nn.sigmoid(out).astype(x.dtype)


if __name__ == "__main__":
    # Module-default feature sizes (input_size=768 -> hidden_size=512 -> 4),
    # small batch/seq.  S=7 exercises the padded (non-divisible) row tail.
    B, S = 2, 7
    D_IN, HID = 768, 512

    key = jax.random.PRNGKey(0)
    kx, kw1, kb1, kw2, kb2, kg, kbe = jax.random.split(key, 7)

    x = jax.random.normal(kx, (B, S, D_IN), dtype=jnp.float32)

    # Deterministic synthetic parameters (Linear: y = x @ W + b, W is (in, out)).
    w1 = jax.random.normal(kw1, (D_IN, HID), dtype=jnp.float32) * (1.0 / math.sqrt(D_IN))
    b1 = jax.random.normal(kb1, (HID,), dtype=jnp.float32) * 0.02
    gamma = 1.0 + 0.1 * jax.random.normal(kg, (HID,), dtype=jnp.float32)
    beta = 0.1 * jax.random.normal(kbe, (HID,), dtype=jnp.float32)
    w2 = jax.random.normal(kw2, (HID, 4), dtype=jnp.float32) * (1.0 / math.sqrt(HID))
    b2 = jax.random.normal(kb2, (4,), dtype=jnp.float32) * 0.02

    ref = region_pred_ref(x, w1, b1, gamma, beta, w2, b2)

    # Exact f32 path (matches the PyTorch module's erf-gelu numerics).
    out = region_pred(x, w1, b1, gamma, beta, w2, b2)
    out = jax.block_until_ready(out)
    assert out.shape == (B, S, 4)
    assert jnp.allclose(out, ref, atol=2e-5, rtol=2e-5), "f32 mismatch vs reference"

    # bf16 fast path (bf16 x/w1/w2 in HBM, both matmuls bf16 on the MXU, f32 acc).
    out_bf = region_pred(x, w1, b1, gamma, beta, w2, b2, compute_dtype=jnp.bfloat16)
    out_bf = jax.block_until_ready(out_bf)
    assert out_bf.shape == (B, S, 4)
    assert float(jnp.max(jnp.abs(out_bf.astype(jnp.float32) - ref))) < 0.05, \
        "bf16 mismatch vs reference"

    print("KERNEL_OK")
</pallas_src>

<mosaic_0001>
module attributes {stable_mosaic.version = 11 : i64} {
  func.func @region_pred_kernel(%arg0: i32, %arg1: memref<16x768xf32, #tpu.memory_space<vmem>>, %arg2: memref<768x512xf32, #tpu.memory_space<vmem>>, %arg3: memref<1x512xf32, #tpu.memory_space<vmem>>, %arg4: memref<1x512xf32, #tpu.memory_space<vmem>>, %arg5: memref<1x512xf32, #tpu.memory_space<vmem>>, %arg6: memref<512x128xf32, #tpu.memory_space<vmem>>, %arg7: memref<1x128xf32, #tpu.memory_space<vmem>>, %arg8: memref<16x128xf32, #tpu.memory_space<vmem>>) attributes {dimension_semantics = [#tpu.dimension_semantics<parallel>], iteration_bounds = array<i64: 1>, scalar_prefetch = 0 : i64, scratch_operands = 0 : i64, tpu.core_type = #tpu.core_type<tc>, window_params = [{transform_indices = @transform_0, window_bounds = array<i64: 16, 768>}, {pipeline_mode = #tpu.pipeline_mode<synchronous>, transform_indices = @transform_1, window_bounds = array<i64: 768, 512>}, {pipeline_mode = #tpu.pipeline_mode<synchronous>, transform_indices = @transform_2, window_bounds = array<i64: 1, 512>}, {pipeline_mode = #tpu.pipeline_mode<synchronous>, transform_indices = @transform_3, window_bounds = array<i64: 1, 512>}, {pipeline_mode = #tpu.pipeline_mode<synchronous>, transform_indices = @transform_4, window_bounds = array<i64: 1, 512>}, {pipeline_mode = #tpu.pipeline_mode<synchronous>, transform_indices = @transform_5, window_bounds = array<i64: 512, 128>}, {pipeline_mode = #tpu.pipeline_mode<synchronous>, transform_indices = @transform_6, window_bounds = array<i64: 1, 128>}, {transform_indices = @transform_7, window_bounds = array<i64: 16, 128>}]} {
    %c0 = arith.constant 0 : index
    %c0_0 = arith.constant 0 : index
    %0 = vector.load %arg1[%c0, %c0_0] : memref<16x768xf32, #tpu.memory_space<vmem>>, vector<16x768xf32>
    %c0_1 = arith.constant 0 : index
    %c0_2 = arith.constant 0 : index
    %1 = vector.load %arg2[%c0_1, %c0_2] : memref<768x512xf32, #tpu.memory_space<vmem>>, vector<768x512xf32>
    %cst = arith.constant dense<0.000000e+00> : vector<16x512xf32>
    %2 = tpu.matmul %0, %1, %cst {dimension_numbers = #tpu.dot_dimension_numbers<[1], [0], [0], [1], [0, 0, 1, 1], [], []>} : vector<16x768xf32>, vector<768x512xf32>, vector<16x512xf32> -> vector<16x512xf32>
    %c0_3 = arith.constant 0 : index
    %c0_4 = arith.constant 0 : index
    %3 = vector.load %arg3[%c0_3, %c0_4] : memref<1x512xf32, #tpu.memory_space<vmem>>, vector<1x512xf32>
    %4 = vector.broadcast %3 : vector<1x512xf32> to vector<16x512xf32>
    %5 = arith.addf %2, %4 : vector<16x512xf32>
    %cst_5 = arith.constant 5.000000e-01 : f32
    %6 = vector.broadcast %cst_5 : f32 to vector<16x512xf32>
    %7 = arith.mulf %5, %6 : vector<16x512xf32>
    %cst_6 = arith.constant 0.707106769 : f32
    %8 = vector.broadcast %cst_6 : f32 to vector<16x512xf32>
    %9 = arith.mulf %5, %8 : vector<16x512xf32>
    %10 = math.erf %9 : vector<16x512xf32>
    %cst_7 = arith.constant 1.000000e+00 : f32
    %11 = vector.broadcast %cst_7 : f32 to vector<16x512xf32>
    %12 = arith.addf %11, %10 : vector<16x512xf32>
    %13 = arith.mulf %7, %12 : vector<16x512xf32>
    %cst_8 = arith.constant dense<0.000000e+00> : vector<16xf32>
    %14 = vector.multi_reduction <add>, %13, %cst_8 [1] : vector<16x512xf32> to vector<16xf32>
    %15 = vector.shape_cast %14 : vector<16xf32> to vector<16x1xf32>
    %cst_9 = arith.constant 5.120000e+02 : f32
    %16 = vector.broadcast %cst_9 : f32 to vector<16x1xf32>
    %17 = arith.divf %15, %16 : vector<16x1xf32>
    %18 = arith.mulf %13, %13 : vector<16x512xf32>
    %cst_10 = arith.constant dense<0.000000e+00> : vector<16xf32>
    %19 = vector.multi_reduction <add>, %18, %cst_10 [1] : vector<16x512xf32> to vector<16xf32>
    %20 = vector.shape_cast %19 : vector<16xf32> to vector<16x1xf32>
    %cst_11 = arith.constant 5.120000e+02 : f32
    %21 = vector.broadcast %cst_11 : f32 to vector<16x1xf32>
    %22 = arith.divf %20, %21 : vector<16x1xf32>
    %23 = arith.mulf %17, %17 : vector<16x1xf32>
    %24 = arith.subf %22, %23 : vector<16x1xf32>
    %25 = vector.broadcast %17 : vector<16x1xf32> to vector<16x512xf32>
    %26 = arith.subf %13, %25 : vector<16x512xf32>
    %cst_12 = arith.constant 9.99999996E-13 : f32
    %27 = vector.broadcast %cst_12 : f32 to vector<16x1xf32>
    %28 = arith.addf %24, %27 : vector<16x1xf32>
    %29 = math.rsqrt %28 : vector<16x1xf32>
    %30 = vector.broadcast %29 : vector<16x1xf32> to vector<16x512xf32>
    %31 = arith.mulf %26, %30 : vector<16x512xf32>
    %c0_13 = arith.constant 0 : index
    %c0_14 = arith.constant 0 : index
    %32 = vector.load %arg4[%c0_13, %c0_14] : memref<1x512xf32, #tpu.memory_space<vmem>>, vector<1x512xf32>
    %33 = vector.broadcast %32 : vector<1x512xf32> to vector<16x512xf32>
    %34 = arith.mulf %31, %33 : vector<16x512xf32>
    %c0_15 = arith.constant 0 : index
    %c0_16 = arith.constant 0 : index
    %35 = vector.load %arg5[%c0_15, %c0_16] : memref<1x512xf32, #tpu.memory_space<vmem>>, vector<1x512xf32>
    %36 = vector.broadcast %35 : vector<1x512xf32> to vector<16x512xf32>
    %37 = arith.addf %34, %36 : vector<16x512xf32>
    %c0_17 = arith.constant 0 : index
    %c0_18 = arith.constant 0 : index
    %38 = vector.load %arg6[%c0_17, %c0_18] : memref<512x128xf32, #tpu.memory_space<vmem>>, vector<512x128xf32>
    %cst_19 = arith.constant dense<0.000000e+00> : vector<16x128xf32>
    %39 = tpu.matmul %37, %38, %cst_19 {dimension_numbers = #tpu.dot_dimension_numbers<[1], [0], [0], [1], [0, 0, 1, 1], [], []>} : vector<16x512xf32>, vector<512x128xf32>, vector<16x128xf32> -> vector<16x128xf32>
    %c0_20 = arith.constant 0 : index
    %c0_21 = arith.constant 0 : index
    %40 = vector.load %arg7[%c0_20, %c0_21] : memref<1x128xf32, #tpu.memory_space<vmem>>, vector<1x128xf32>
    %41 = vector.broadcast %40 : vector<1x128xf32> to vector<16x128xf32>
    %42 = arith.addf %39, %41 : vector<16x128xf32>
    %43 = arith.negf %42 : vector<16x128xf32>
    %44 = math.exp %43 : vector<16x128xf32>
    %cst_22 = arith.constant 1.000000e+00 : f32
    %45 = vector.broadcast %cst_22 : f32 to vector<16x128xf32>
    %46 = arith.addf %45, %44 : vector<16x128xf32>
    %47 = arith.divf %45, %46 : vector<16x128xf32>
    %c0_23 = arith.constant 0 : index
    %c0_24 = arith.constant 0 : index
    %48 = vector.load %arg8[%c0_23, %c0_24] : memref<16x128xf32, #tpu.memory_space<vmem>>, vector<16x128xf32>
    tpu.vector_store %arg8[%c0_23, %c0_24], %47 {strides = array<i32>} : memref<16x128xf32, #tpu.memory_space<vmem>>, vector<16x128xf32>,
    return
  }
  func.func @transform_0(%arg0: i32) -> (i32, i32) {
    %c0_i32 = arith.constant 0 : i32
    %c0_i32_0 = arith.constant 0 : i32
    return %arg0, %c0_i32 : i32, i32
  }
  func.func @transform_1(%arg0: i32) -> (i32, i32) {
    %c0_i32 = arith.constant 0 : i32
    %c0_i32_0 = arith.constant 0 : i32
    %c0_i32_1 = arith.constant 0 : i32
    return %c0_i32, %c0_i32_0 : i32, i32
  }
  func.func @transform_2(%arg0: i32) -> (i32, i32) {
    %c0_i32 = arith.constant 0 : i32
    %c0_i32_0 = arith.constant 0 : i32
    %c0_i32_1 = arith.constant 0 : i32
    return %c0_i32, %c0_i32_0 : i32, i32
  }
  func.func @transform_3(%arg0: i32) -> (i32, i32) {
    %c0_i32 = arith.constant 0 : i32
    %c0_i32_0 = arith.constant 0 : i32
    %c0_i32_1 = arith.constant 0 : i32
    return %c0_i32, %c0_i32_0 : i32, i32
  }
  func.func @transform_4(%arg0: i32) -> (i32, i32) {
    %c0_i32 = arith.constant 0 : i32
    %c0_i32_0 = arith.constant 0 : i32
    %c0_i32_1 = arith.constant 0 : i32
    return %c0_i32, %c0_i32_0 : i32, i32
  }
  func.func @transform_5(%arg0: i32) -> (i32, i32) {
    %c0_i32 = arith.constant 0 : i32
    %c0_i32_0 = arith.constant 0 : i32
    %c0_i32_1 = arith.constant 0 : i32
    return %c0_i32, %c0_i32_0 : i32, i32
  }
  func.func @transform_6(%arg0: i32) -> (i32, i32) {
    %c0_i32 = arith.constant 0 : i32
    %c0_i32_0 = arith.constant 0 : i32
    %c0_i32_1 = arith.constant 0 : i32
    return %c0_i32, %c0_i32_0 : i32, i32
  }
  func.func @transform_7(%arg0: i32) -> (i32, i32) {
    %c0_i32 = arith.constant 0 : i32
    %c0_i32_0 = arith.constant 0 : i32
    return %arg0, %c0_i32 : i32, i32
  }
}

</mosaic_0001>

<llo_original>
// kernel: tpu_custom_call.1
$region0: #{tpu_custom_call.1}
  #allocation0 [shape = 'u32[]', space=smem, size = 0x4, offset = 0x4, fixed_abs, tag = 'smem constant byte address 0x4 - core index']
  #allocation1 [shape = 'u32[144,128]{1,0:T(1,128)}', space=vmem, size = 0x12000, scoped, tag = 'internal scratch']
  %s0 = inlined_call_operand.hbm [shape: f32[16,768], index: 0, kind: input, shape index: {}]
  %s1 = inlined_call_operand.hbm [shape: f32[768,512], index: 1, kind: input, shape index: {}]
  %s2 = inlined_call_operand.hbm [shape: f32[1,512], index: 2, kind: input, shape index: {}]
  %s3 = inlined_call_operand.hbm [shape: f32[1,512], index: 3, kind: input, shape index: {}]
  %s4 = inlined_call_operand.hbm [shape: f32[1,512], index: 4, kind: input, shape index: {}]
  %s5 = inlined_call_operand.hbm [shape: f32[512,128], index: 5, kind: input, shape index: {}]
  %s6 = inlined_call_operand.hbm [shape: f32[1,128], index: 6, kind: input, shape index: {}]
  %s7 = inlined_call_operand.hbm [shape: f32[16,128], index: 7, kind: output, shape index: {}]
  %s8 = sld [smem:[#allocation0]]
  $region66: #{tpu_custom_call.1} parent=0
    _
  %s10 = ssub.s32 1, %s8
  %s11 = scalar_select 0, %s10, %s8
  $region1: #{tpu_custom_call.1} parent=0
    #allocation2 [shape = 'u8[49152]{0}', space=vmem, size = 0xc000, scoped, tag = 'input window, operand 0, single buffered']
    #allocation3 [shape = 's32[1]{0}', space=sflag, size = 0x4, scoped, tag = 'scoped memory for tpu_custom_call.1']
    #allocation4 [shape = 's32[1]{0}', space=sflag, size = 0x4, scoped, tag = 'scoped memory for tpu_custom_call.1']
    #allocation5 [shape = 'u8[1572864]{0}', space=vmem, size = 0x180000, scoped, tag = 'input window, operand 1, single buffered']
    #allocation6 [shape = 's32[1]{0}', space=sflag, size = 0x4, scoped, tag = 'scoped memory for tpu_custom_call.1']
    #allocation7 [shape = 'u8[2048]{0}', space=vmem, size = 0x800, scoped, tag = 'input window, operand 2, single buffered']
    #allocation8 [shape = 'u8[2048]{0}', space=vmem, size = 0x800, scoped, tag = 'input window, operand 3, single buffered']
    #allocation9 [shape = 's32[1]{0}', space=sflag, size = 0x4, scoped, tag = 'scoped memory for tpu_custom_call.1']
    #allocation10 [shape = 'u8[2048]{0}', space=vmem, size = 0x800, scoped, tag = 'input window, operand 4, single buffered']
    #allocation11 [shape = 'u8[262144]{0}', space=vmem, size = 0x40000, scoped, tag = 'input window, operand 5, single buffered']
    #allocation12 [shape = 's32[1]{0}', space=sflag, size = 0x4, scoped, tag = 'scoped memory for tpu_custom_call.1']
    #allocation13 [shape = 'u8[512]{0}', space=vmem, size = 0x400, scoped, tag = 'input window, operand 6, single buffered']
    #allocation14 [shape = 'u8[8192]{0}', space=vmem, size = 0x2000, scoped, tag = 'output window, operand 0, single buffered']
    %12 = vsyncpa [#allocation3], 0
    %13 = vsyncpa [#allocation6], 0
    %14 = vsyncpa [#allocation9], 0
    %15 = vsyncpa [#allocation12], 0
    %16 = vsyncpa [#allocation4], 0
    // Predicated region
    $region2: #{tpu_custom_call.1} parent=1 // pred_check
      _
    $region3: #{tpu_custom_call.1} parent=1 // pred_check_branch
      %18 = sbr.rel (0) target = $region5
    $region4: #{tpu_custom_call.1} parent=1 // pred_region
      %s20 = ssub.s32 1536, 1536
      %21 = vsyncadd [#allocation3], %s20
      %s22 = sshll.u32 [#allocation2], 4
      %s23 = int_to_ptr.vmem [resolvable:$true] %s22
      %28 = dma.hbm_to_vmem [thread:$0]  %s0, 1536, %s23, [#allocation3], 768, 768, 48
    $region5: #{tpu_custom_call.1} parent=1 // pred_fallthru
      _
    // Predicated region
    $region6: #{tpu_custom_call.1} parent=1 // pred_check
      _
    $region7: #{tpu_custom_call.1} parent=1 // pred_check_branch
      %30 = sbr.rel (0) target = $region9
    $region8: #{tpu_custom_call.1} parent=1 // pred_region
      %s32 = ssub.s32 49152, 49152
      %33 = vsyncadd [#allocation6], %s32
      %s34 = sshll.u32 [#allocation5], 4
      %s35 = int_to_ptr.vmem [resolvable:$true] %s34
      %40 = dma.hbm_to_vmem [thread:$0]  %s1, 49152, %s35, [#allocation6], 512, 512, 32
    $region9: #{tpu_custom_call.1} parent=1 // pred_fallthru
      _
    // Predicated region
    $region10: #{tpu_custom_call.1} parent=1 // pred_check
      _
    $region11: #{tpu_custom_call.1} parent=1 // pred_check_branch
      %42 = sbr.rel (0) target = $region13
    $region12: #{tpu_custom_call.1} parent=1 // pred_region
      %s44 = ssub.s32 64, 64
      %45 = vsyncadd [#allocation6], %s44
      %s47 = sshll.u32 [#allocation7], 4
      %s48 = int_to_ptr.vmem [resolvable:$true] %s47
      %50 = dma.hbm_to_vmem [thread:$0]  %s2, 64, %s48, [#allocation6]
    $region13: #{tpu_custom_call.1} parent=1 // pred_fallthru
      _
    // Predicated region
    $region14: #{tpu_custom_call.1} parent=1 // pred_check
      _
    $region15: #{tpu_custom_call.1} parent=1 // pred_check_branch
      %52 = sbr.rel (0) target = $region17
    $region16: #{tpu_custom_call.1} parent=1 // pred_region
      %s54 = ssub.s32 64, 64
      %55 = vsyncadd [#allocation9], %s54
      %s57 = sshll.u32 [#allocation8], 4
      %s58 = int_to_ptr.vmem [resolvable:$true] %s57
      %60 = dma.hbm_to_vmem [thread:$0]  %s3, 64, %s58, [#allocation9]
    $region17: #{tpu_custom_call.1} parent=1 // pred_fallthru
      _
    // Predicated region
    $region18: #{tpu_custom_call.1} parent=1 // pred_check
      _
    $region19: #{tpu_custom_call.1} parent=1 // pred_check_branch
      %62 = sbr.rel (0) target = $region21
    $region20: #{tpu_custom_call.1} parent=1 // pred_region
      %s64 = ssub.s32 64, 64
      %65 = vsyncadd [#allocation9], %s64
      %s67 = sshll.u32 [#allocation10], 4
      %s68 = int_to_ptr.vmem [resolvable:$true] %s67
      %70 = dma.hbm_to_vmem [thread:$0]  %s4, 64, %s68, [#allocation9]
    $region21: #{tpu_custom_call.1} parent=1 // pred_fallthru
      _
    // Predicated region
    $region22: #{tpu_custom_call.1} parent=1 // pred_check
      _
    $region23: #{tpu_custom_call.1} parent=1 // pred_check_branch
      %72 = sbr.rel (0) target = $region25
    $region24: #{tpu_custom_call.1} parent=1 // pred_region
      %s74 = ssub.s32 8192, 8192
      %75 = vsyncadd [#allocation12], %s74
      %s76 = sshll.u32 [#allocation11], 4
      %s77 = int_to_ptr.vmem [resolvable:$true] %s76
      %82 = dma.hbm_to_vmem [thread:$0]  %s5, 8192, %s77, [#allocation12], 128, 128, 8
    $region25: #{tpu_custom_call.1} parent=1 // pred_fallthru
      _
    // Predicated region
    $region26: #{tpu_custom_call.1} parent=1 // pred_check
      _
    $region27: #{tpu_custom_call.1} parent=1 // pred_check_branch
      %84 = sbr.rel (0) target = $region29
    $region28: #{tpu_custom_call.1} parent=1 // pred_region
      %s86 = ssub.s32 16, 16
      %87 = vsyncadd [#allocation12], %s86
      %s89 = sshll.u32 [#allocation13], 4
      %s90 = int_to_ptr.vmem [resolvable:$true] %s89
      %92 = dma.hbm_to_vmem [thread:$0]  %s6, 16, %s90, [#allocation12]
    $region29: #{tpu_custom_call.1} parent=1 // pred_fallthru
      _
    // Predicated region
    $region30: #{tpu_custom_call.1} parent=1 // pred_check
      _
    $region31: #{tpu_custom_call.1} parent=1 // pred_check_branch
      %94 = sbr.rel (0) target = $region33
    $region32: #{tpu_custom_call.1} parent=1 // pred_region
      %95 = dma.done [#allocation3], 1536
    $region33: #{tpu_custom_call.1} parent=1 // pred_fallthru
      _
    // Predicated region
    $region34: #{tpu_custom_call.1} parent=1 // pred_check
      _
    $region35: #{tpu_custom_call.1} parent=1 // pred_check_branch
      %97 = sbr.rel (0) target = $region37
    $region36: #{tpu_custom_call.1} parent=1 // pred_region
      %98 = dma.done [#allocation6], 49152
    $region37: #{tpu_custom_call.1} parent=1 // pred_fallthru
      _
    // Predicated region
    $region38: #{tpu_custom_call.1} parent=1 // pred_check
      _
    $region39: #{tpu_custom_call.1} parent=1 // pred_check_branch
      %100 = sbr.rel (0) target = $region41
    $region40: #{tpu_custom_call.1} parent=1 // pred_region
      %101 = dma.done [#allocation6], 64
    $region41: #{tpu_custom_call.1} parent=1 // pred_fallthru
      _
    // Predicated region
    $region42: #{tpu_custom_call.1} parent=1 // pred_check
      _
    $region43: #{tpu_custom_call.1} parent=1 // pred_check_branch
      %103 = sbr.rel (0) target = $region45
    $region44: #{tpu_custom_call.1} parent=1 // pred_region
      %104 = dma.done [#allocation9], 64
    $region45: #{tpu_custom_call.1} parent=1 // pred_fallthru
      _
    // Predicated region
    $region46: #{tpu_custom_call.1} parent=1 // pred_check
      _
    $region47: #{tpu_custom_call.1} parent=1 // pred_check_branch
      %106 = sbr.rel (0) target = $region49
    $region48: #{tpu_custom_call.1} parent=1 // pred_region
      %107 = dma.done [#allocation9], 64
    $region49: #{tpu_custom_call.1} parent=1 // pred_fallthru
      _
    // Predicated region
    $region50: #{tpu_custom_call.1} parent=1 // pred_check
      _
    $region51: #{tpu_custom_call.1} parent=1 // pred_check_branch
      %109 = sbr.rel (0) target = $region53
    $region52: #{tpu_custom_call.1} parent=1 // pred_region
      %110 = dma.done [#allocation12], 8192
    $region53: #{tpu_custom_call.1} parent=1 // pred_fallthru
      _
    // Predicated region
    $region54: #{tpu_custom_call.1} parent=1 // pred_check
      _
    $region55: #{tpu_custom_call.1} parent=1 // pred_check_branch
      %112 = sbr.rel (0) target = $region57
    $region56: #{tpu_custom_call.1} parent=1 // pred_region
      %113 = dma.done [#allocation12], 16
    $region57: #{tpu_custom_call.1} parent=1 // pred_fallthru
      _
    %v114 = vld [vmem:[#allocation2] sm:$0xff]
    %v115 = vld [vmem:[#allocation2 + $0x8] sm:$0xff]
    %v116 = vld [vmem:[#allocation2 + $0x10] sm:$0xff]
    %v117 = vld [vmem:[#allocation2 + $0x18] sm:$0xff]
    %v118 = vld [vmem:[#allocation2 + $0x20] sm:$0xff]
    %v119 = vld [vmem:[#allocation2 + $0x28] sm:$0xff]
    %v120 = vld [vmem:[#allocation2 + $0x30] sm:$0xff]
    %v121 = vld [vmem:[#allocation2 + $0x38] sm:$0xff]
    %v122 = vld [vmem:[#allocation2 + $0x40] sm:$0xff]
    %v123 = vld [vmem:[#allocation2 + $0x48] sm:$0xff]
    %v124 = vld [vmem:[#allocation2 + $0x50] sm:$0xff]
    %v125 = vld [vmem:[#allocation2 + $0x58] sm:$0xff]
    %v126 = vld [vmem:[#allocation5] sm:$0xff]
    %v127 = vld [vmem:[#allocation5 + $0x8] sm:$0xff]
    %v128 = vld [vmem:[#allocation5 + $0x10] sm:$0xff]
    %v129 = vld [vmem:[#allocation5 + $0x18] sm:$0xff]
    %v130 = vld [vmem:[#allocation5 + $0x20] sm:$0xff]
    %v131 = vld [vmem:[#allocation5 + $0x28] sm:$0xff]
    %v132 = vld [vmem:[#allocation5 + $0x30] sm:$0xff]
    %v133 = vld [vmem:[#allocation5 + $0x38] sm:$0xff]
    %v134 = vld [vmem:[#allocation5 + $0x40] sm:$0xff]
    %v135 = vld [vmem:[#allocation5 + $0x48] sm:$0xff]
    %v136 = vld [vmem:[#allocation5 + $0x50] sm:$0xff]
    %v137 = vld [vmem:[#allocation5 + $0x58] sm:$0xff]
    %v138 = vld [vmem:[#allocation5 + $0x60] sm:$0xff]
    %v139 = vld [vmem:[#allocation5 + $0x68] sm:$0xff]
    %v140 = vld [vmem:[#allocation5 + $0x70] sm:$0xff]
    %v141 = vld [vmem:[#allocation5 + $0x78] sm:$0xff]
    %v142 = vld [vmem:[#allocation5 + $0x80] sm:$0xff]
    %v143 = vld [vmem:[#allocation5 + $0x88] sm:$0xff]
    %v144 = vld [vmem:[#allocation5 + $0x90] sm:$0xff]
    %v145 = vld [vmem:[#allocation5 + $0x98] sm:$0xff]
    %v146 = vld [vmem:[#allocation5 + $0xa0] sm:$0xff]
    %v147 = vld [vmem:[#allocation5 + $0xa8] sm:$0xff]
    %v148 = vld [vmem:[#allocation5 + $0xb0] sm:$0xff]
    %v149 = vld [vmem:[#allocation5 + $0xb8] sm:$0xff]
    %v150 = vld [vmem:[#allocation5 + $0xc0] sm:$0xff]
    %v151 = vld [vmem:[#allocation5 + $0xc8] sm:$0xff]
    %v152 = vld [vmem:[#allocation5 + $0xd0] sm:$0xff]
    %v153 = vld [vmem:[#allocation5 + $0xd8] sm:$0xff]
    %v154 = vld [vmem:[#allocation5 + $0xe0] sm:$0xff]
    %v155 = vld [vmem:[#allocation5 + $0xe8] sm:$0xff]
    %v156 = vld [vmem:[#allocation5 + $0xf0] sm:$0xff]
    %v157 = vld [vmem:[#allocation5 + $0xf8] sm:$0xff]
    %v158 = vld [vmem:[#allocation5 + $0x100] sm:$0xff]
    %v159 = vld [vmem:[#allocation5 + $0x108] sm:$0xff]
    %v160 = vld [vmem:[#allocation5 + $0x110] sm:$0xff]
    %v161 = vld [vmem:[#allocation5 + $0x118] sm:$0xff]
    %v162 = vld [vmem:[#allocation5 + $0x120] sm:$0xff]
    %v163 = vld [vmem:[#allocation5 + $0x128] sm:$0xff]
    %v164 = vld [vmem:[#allocation5 + $0x130] sm:$0xff]
    %v165 = vld [vmem:[#allocation5 + $0x138] sm:$0xff]
    %v166 = vld [vmem:[#allocation5 + $0x140] sm:$0xff]
    %v167 = vld [vmem:[#allocation5 + $0x148] sm:$0xff]
    %v168 = vld [vmem:[#allocation5 + $0x150] sm:$0xff]
    %v169 = vld [vmem:[#allocation5 + $0x158] sm:$0xff]
    %v170 = vld [vmem:[#allocation5 + $0x160] sm:$0xff]
    %v171 = vld [vmem:[#allocation5 + $0x168] sm:$0xff]
    %v172 = vld [vmem:[#allocation5 + $0x170] sm:$0xff]
    %v173 = vld [vmem:[#allocation5 + $0x178] sm:$0xff]
    %v174 = vld [vmem:[#allocation5 + $0x180] sm:$0xff]
    %v175 = vld [vmem:[#allocation5 + $0x188] sm:$0xff]
    %v176 = vld [vmem:[#allocation5 + $0x190] sm:$0xff]
    %v177 = vld [vmem:[#allocation5 + $0x198] sm:$0xff]
    %v178 = vld [vmem:[#allocation5 + $0x1a0] sm:$0xff]
    %v179 = vld [vmem:[#allocation5 + $0x1a8] sm:$0xff]
    %v180 = vld [vmem:[#allocation5 + $0x1b0] sm:$0xff]
    %v181 = vld [vmem:[#allocation5 + $0x1b8] sm:$0xff]
    %v182 = vld [vmem:[#allocation5 + $0x1c0] sm:$0xff]
    %v183 = vld [vmem:[#allocation5 + $0x1c8] sm:$0xff]
    %v184 = vld [vmem:[#allocation5 + $0x1d0] sm:$0xff]
    %v185 = vld [vmem:[#allocation5 + $0x1d8] sm:$0xff]
    %v186 = vld [vmem:[#allocation5 + $0x1e0] sm:$0xff]
    %v187 = vld [vmem:[#allocation5 + $0x1e8] sm:$0xff]
    %v188 = vld [vmem:[#allocation5 + $0x1f0] sm:$0xff]
    %v189 = vld [vmem:[#allocation5 + $0x1f8] sm:$0xff]
    %v190 = vld [vmem:[#allocation5 + $0x200] sm:$0xff]
    %v191 = vld [vmem:[#allocation5 + $0x208] sm:$0xff]
    %v192 = vld [vmem:[#allocation5 + $0x210] sm:$0xff]
    %v193 = vld [vmem:[#allocation5 + $0x218] sm:$0xff]
    %v194 = vld [vmem:[#allocation5 + $0x220] sm:$0xff]
    %v195 = vld [vmem:[#allocation5 + $0x228] sm:$0xff]
    %v196 = vld [vmem:[#allocation5 + $0x230] sm:$0xff]
    %v197 = vld [vmem:[#allocation5 + $0x238] sm:$0xff]
    %v198 = vld [vmem:[#allocation5 + $0x240] sm:$0xff]
    %v199 = vld [vmem:[#allocation5 + $0x248] sm:$0xff]
    %v200 = vld [vmem:[#allocation5 + $0x250] sm:$0xff]
    %v201 = vld [vmem:[#allocation5 + $0x258] sm:$0xff]
    %v202 = vld [vmem:[#allocation5 + $0x260] sm:$0xff]
    %v203 = vld [vmem:[#allocation5 + $0x268] sm:$0xff]
    %v204 = vld [vmem:[#allocation5 + $0x270] sm:$0xff]
    %v205 = vld [vmem:[#allocation5 + $0x278] sm:$0xff]
    %v206 = vld [vmem:[#allocation5 + $0x280] sm:$0xff]
    %v207 = vld [vmem:[#allocation5 + $0x288] sm:$0xff]
    %v208 = vld [vmem:[#allocation5 + $0x290] sm:$0xff]
    %v209 = vld [vmem:[#allocation5 + $0x298] sm:$0xff]
    %v210 = vld [vmem:[#allocation5 + $0x2a0] sm:$0xff]
    %v211 = vld [vmem:[#allocation5 + $0x2a8] sm:$0xff]
    %v212 = vld [vmem:[#allocation5 + $0x2b0] sm:$0xff]
    %v213 = vld [vmem:[#allocation5 + $0x2b8] sm:$0xff]
    %v214 = vld [vmem:[#allocation5 + $0x2c0] sm:$0xff]
    %v215 = vld [vmem:[#allocation5 + $0x2c8] sm:$0xff]
    %v216 = vld [vmem:[#allocation5 + $0x2d0] sm:$0xff]
    %v217 = vld [vmem:[#allocation5 + $0x2d8] sm:$0xff]
    %v218 = vld [vmem:[#allocation5 + $0x2e0] sm:$0xff]
    %v219 = vld [vmem:[#allocation5 + $0x2e8] sm:$0xff]
    %v220 = vld [vmem:[#allocation5 + $0x2f0] sm:$0xff]
    %v221 = vld [vmem:[#allocation5 + $0x2f8] sm:$0xff]
    %v222 = vld [vmem:[#allocation5 + $0x300] sm:$0xff]
    %v223 = vld [vmem:[#allocation5 + $0x308] sm:$0xff]
    %v224 = vld [vmem:[#allocation5 + $0x310] sm:$0xff]
    %v225 = vld [vmem:[#allocation5 + $0x318] sm:$0xff]
    %v226 = vld [vmem:[#allocation5 + $0x320] sm:$0xff]
    %v227 = vld [vmem:[#allocation5 + $0x328] sm:$0xff]
    %v228 = vld [vmem:[#allocation5 + $0x330] sm:$0xff]
    %v229 = vld [vmem:[#allocation5 + $0x338] sm:$0xff]
    %v230 = vld [vmem:[#allocation5 + $0x340] sm:$0xff]
    %v231 = vld [vmem:[#allocation5 + $0x348] sm:$0xff]
    %v232 = vld [vmem:[#allocation5 + $0x350] sm:$0xff]
    %v233 = vld [vmem:[#allocation5 + $0x358] sm:$0xff]
    %v234 = vld [vmem:[#allocation5 + $0x360] sm:$0xff]
    %v235 = vld [vmem:[#allocation5 + $0x368] sm:$0xff]
    %v236 = vld [vmem:[#allocation5 + $0x370] sm:$0xff]
    %v237 = vld [vmem:[#allocation5 + $0x378] sm:$0xff]
    %v238 = vld [vmem:[#allocation5 + $0x380] sm:$0xff]
    %v239 = vld [vmem:[#allocation5 + $0x388] sm:$0xff]
    %v240 = vld [vmem:[#allocation5 + $0x390] sm:$0xff]
    %v241 = vld [vmem:[#allocation5 + $0x398] sm:$0xff]
    %v242 = vld [vmem:[#allocation5 + $0x3a0] sm:$0xff]
    %v243 = vld [vmem:[#allocation5 + $0x3a8] sm:$0xff]
    %v244 = vld [vmem:[#allocation5 + $0x3b0] sm:$0xff]
    %v245 = vld [vmem:[#allocation5 + $0x3b8] sm:$0xff]
    %v246 = vld [vmem:[#allocation5 + $0x3c0] sm:$0xff]
    %v247 = vld [vmem:[#allocation5 + $0x3c8] sm:$0xff]
    %v248 = vld [vmem:[#allocation5 + $0x3d0] sm:$0xff]
    %v249 = vld [vmem:[#allocation5 + $0x3d8] sm:$0xff]
    %v250 = vld [vmem:[#allocation5 + $0x3e0] sm:$0xff]
    %v251 = vld [vmem:[#allocation5 + $0x3e8] sm:$0xff]
    %v252 = vld [vmem:[#allocation5 + $0x3f0] sm:$0xff]
    %v253 = vld [vmem:[#allocation5 + $0x3f8] sm:$0xff]
    %v254 = vld [vmem:[#allocation5 + $0x400] sm:$0xff]
    %v255 = vld [vmem:[#allocation5 + $0x408] sm:$0xff]
    %v256 = vld [vmem:[#allocation5 + $0x410] sm:$0xff]
    %v257 = vld [vmem:[#allocation5 + $0x418] sm:$0xff]
    %v258 = vld [vmem:[#allocation5 + $0x420] sm:$0xff]
    %v259 = vld [vmem:[#allocation5 + $0x428] sm:$0xff]
    %v260 = vld [vmem:[#allocation5 + $0x430] sm:$0xff]
    %v261 = vld [vmem:[#allocation5 + $0x438] sm:$0xff]
    %v262 = vld [vmem:[#allocation5 + $0x440] sm:$0xff]
    %v263 = vld [vmem:[#allocation5 + $0x448] sm:$0xff]
    %v264 = vld [vmem:[#allocation5 + $0x450] sm:$0xff]
    %v265 = vld [vmem:[#allocation5 + $0x458] sm:$0xff]
    %v266 = vld [vmem:[#allocation5 + $0x460] sm:$0xff]
    %v267 = vld [vmem:[#allocation5 + $0x468] sm:$0xff]
    %v268 = vld [vmem:[#allocation5 + $0x470] sm:$0xff]
    %v269 = vld [vmem:[#allocation5 + $0x478] sm:$0xff]
    %v270 = vld [vmem:[#allocation5 + $0x480] sm:$0xff]
    %v271 = vld [vmem:[#allocation5 + $0x488] sm:$0xff]
    %v272 = vld [vmem:[#allocation5 + $0x490] sm:$0xff]
    %v273 = vld [vmem:[#allocation5 + $0x498] sm:$0xff]
    %v274 = vld [vmem:[#allocation5 + $0x4a0] sm:$0xff]
    %v275 = vld [vmem:[#allocation5 + $0x4a8] sm:$0xff]
    %v276 = vld [vmem:[#allocation5 + $0x4b0] sm:$0xff]
    %v277 = vld [vmem:[#allocation5 + $0x4b8] sm:$0xff]
    %v278 = vld [vmem:[#allocation5 + $0x4c0] sm:$0xff]
    %v279 = vld [vmem:[#allocation5 + $0x4c8] sm:$0xff]
    %v280 = vld [vmem:[#allocation5 + $0x4d0] sm:$0xff]
    %v281 = vld [vmem:[#allocation5 + $0x4d8] sm:$0xff]
    %v282 = vld [vmem:[#allocation5 + $0x4e0] sm:$0xff]
    %v283 = vld [vmem:[#allocation5 + $0x4e8] sm:$0xff]
    %v284 = vld [vmem:[#allocation5 + $0x4f0] sm:$0xff]
    %v285 = vld [vmem:[#allocation5 + $0x4f8] sm:$0xff]
    %v286 = vld [vmem:[#allocation5 + $0x500] sm:$0xff]
    %v287 = vld [vmem:[#allocation5 + $0x508] sm:$0xff]
    %v288 = vld [vmem:[#allocation5 + $0x510] sm:$0xff]
    %v289 = vld [vmem:[#allocation5 + $0x518] sm:$0xff]
    %v290 = vld [vmem:[#allocation5 + $0x520] sm:$0xff]
    %v291 = vld [vmem:[#allocation5 + $0x528] sm:$0xff]
    %v292 = vld [vmem:[#allocation5 + $0x530] sm:$0xff]
    %v293 = vld [vmem:[#allocation5 + $0x538] sm:$0xff]
    %v294 = vld [vmem:[#allocation5 + $0x540] sm:$0xff]
    %v295 = vld [vmem:[#allocation5 + $0x548] sm:$0xff]
    %v296 = vld [vmem:[#allocation5 + $0x550] sm:$0xff]
    %v297 = vld [vmem:[#allocation5 + $0x558] sm:$0xff]
    %v298 = vld [vmem:[#allocation5 + $0x560] sm:$0xff]
    %v299 = vld [vmem:[#allocation5 + $0x568] sm:$0xff]
    %v300 = vld [vmem:[#allocation5 + $0x570] sm:$0xff]
    %v301 = vld [vmem:[#allocation5 + $0x578] sm:$0xff]
    %v302 = vld [vmem:[#allocation5 + $0x580] sm:$0xff]
    %v303 = vld [vmem:[#allocation5 + $0x588] sm:$0xff]
    %v304 = vld [vmem:[#allocation5 + $0x590] sm:$0xff]
    %v305 = vld [vmem:[#allocation5 + $0x598] sm:$0xff]
    %v306 = vld [vmem:[#allocation5 + $0x5a0] sm:$0xff]
    %v307 = vld [vmem:[#allocation5 + $0x5a8] sm:$0xff]
    %v308 = vld [vmem:[#allocation5 + $0x5b0] sm:$0xff]
    %v309 = vld [vmem:[#allocation5 + $0x5b8] sm:$0xff]
    %v310 = vld [vmem:[#allocation5 + $0x5c0] sm:$0xff]
    %v311 = vld [vmem:[#allocation5 + $0x5c8] sm:$0xff]
    %v312 = vld [vmem:[#allocation5 + $0x5d0] sm:$0xff]
    %v313 = vld [vmem:[#allocation5 + $0x5d8] sm:$0xff]
    %v314 = vld [vmem:[#allocation5 + $0x5e0] sm:$0xff]
    %v315 = vld [vmem:[#allocation5 + $0x5e8] sm:$0xff]
    %v316 = vld [vmem:[#allocation5 + $0x5f0] sm:$0xff]
    %v317 = vld [vmem:[#allocation5 + $0x5f8] sm:$0xff]
    %v318 = vld [vmem:[#allocation5 + $0x600] sm:$0xff]
    %v319 = vld [vmem:[#allocation5 + $0x608] sm:$0xff]
    %v320 = vld [vmem:[#allocation5 + $0x610] sm:$0xff]
    %v321 = vld [vmem:[#allocation5 + $0x618] sm:$0xff]
    %v322 = vld [vmem:[#allocation5 + $0x620] sm:$0xff]
    %v323 = vld [vmem:[#allocation5 + $0x628] sm:$0xff]
    %v324 = vld [vmem:[#allocation5 + $0x630] sm:$0xff]
    %v325 = vld [vmem:[#allocation5 + $0x638] sm:$0xff]
    %v326 = vld [vmem:[#allocation5 + $0x640] sm:$0xff]
    %v327 = vld [vmem:[#allocation5 + $0x648] sm:$0xff]
    %v328 = vld [vmem:[#allocation5 + $0x650] sm:$0xff]
    %v329 = vld [vmem:[#allocation5 + $0x658] sm:$0xff]
    %v330 = vld [vmem:[#allocation5 + $0x660] sm:$0xff]
    %v331 = vld [vmem:[#allocation5 + $0x668] sm:$0xff]
    %v332 = vld [vmem:[#allocation5 + $0x670] sm:$0xff]
    %v333 = vld [vmem:[#allocation5 + $0x678] sm:$0xff]
    %v334 = vld [vmem:[#allocation5 + $0x680] sm:$0xff]
    %v335 = vld [vmem:[#allocation5 + $0x688] sm:$0xff]
    %v336 = vld [vmem:[#allocation5 + $0x690] sm:$0xff]
    %v337 = vld [vmem:[#allocation5 + $0x698] sm:$0xff]
    %v338 = vld [vmem:[#allocation5 + $0x6a0] sm:$0xff]
    %v339 = vld [vmem:[#allocation5 + $0x6a8] sm:$0xff]
    %v340 = vld [vmem:[#allocation5 + $0x6b0] sm:$0xff]
    %v341 = vld [vmem:[#allocation5 + $0x6b8] sm:$0xff]
    %v342 = vld [vmem:[#allocation5 + $0x6c0] sm:$0xff]
    %v343 = vld [vmem:[#allocation5 + $0x6c8] sm:$0xff]
    %v344 = vld [vmem:[#allocation5 + $0x6d0] sm:$0xff]
    %v345 = vld [vmem:[#allocation5 + $0x6d8] sm:$0xff]
    %v346 = vld [vmem:[#allocation5 + $0x6e0] sm:$0xff]
    %v347 = vld [vmem:[#allocation5 + $0x6e8] sm:$0xff]
    %v348 = vld [vmem:[#allocation5 + $0x6f0] sm:$0xff]
    %v349 = vld [vmem:[#allocation5 + $0x6f8] sm:$0xff]
    %v350 = vld [vmem:[#allocation5 + $0x700] sm:$0xff]
    %v351 = vld [vmem:[#allocation5 + $0x708] sm:$0xff]
    %v352 = vld [vmem:[#allocation5 + $0x710] sm:$0xff]
    %v353 = vld [vmem:[#allocation5 + $0x718] sm:$0xff]
    %v354 = vld [vmem:[#allocation5 + $0x720] sm:$0xff]
    %v355 = vld [vmem:[#allocation5 + $0x728] sm:$0xff]
    %v356 = vld [vmem:[#allocation5 + $0x730] sm:$0xff]
    %v357 = vld [vmem:[#allocation5 + $0x738] sm:$0xff]
    %v358 = vld [vmem:[#allocation5 + $0x740] sm:$0xff]
    %v359 = vld [vmem:[#allocation5 + $0x748] sm:$0xff]
    %v360 = vld [vmem:[#allocation5 + $0x750] sm:$0xff]
    %v361 = vld [vmem:[#allocation5 + $0x758] sm:$0xff]
    %v362 = vld [vmem:[#allocation5 + $0x760] sm:$0xff]
    %v363 = vld [vmem:[#allocation5 + $0x768] sm:$0xff]
    %v364 = vld [vmem:[#allocation5 + $0x770] sm:$0xff]
    %v365 = vld [vmem:[#allocation5 + $0x778] sm:$0xff]
    %v366 = vld [vmem:[#allocation5 + $0x780] sm:$0xff]
    %v367 = vld [vmem:[#allocation5 + $0x788] sm:$0xff]
    %v368 = vld [vmem:[#allocation5 + $0x790] sm:$0xff]
    %v369 = vld [vmem:[#allocation5 + $0x798] sm:$0xff]
    %v370 = vld [vmem:[#allocation5 + $0x7a0] sm:$0xff]
    %v371 = vld [vmem:[#allocation5 + $0x7a8] sm:$0xff]
    %v372 = vld [vmem:[#allocation5 + $0x7b0] sm:$0xff]
    %v373 = vld [vmem:[#allocation5 + $0x7b8] sm:$0xff]
    %v374 = vld [vmem:[#allocation5 + $0x7c0] sm:$0xff]
    %v375 = vld [vmem:[#allocation5 + $0x7c8] sm:$0xff]
    %v376 = vld [vmem:[#allocation5 + $0x7d0] sm:$0xff]
    %v377 = vld [vmem:[#allocation5 + $0x7d8] sm:$0xff]
    %v378 = vld [vmem:[#allocation5 + $0x7e0] sm:$0xff]
    %v379 = vld [vmem:[#allocation5 + $0x7e8] sm:$0xff]
    %v380 = vld [vmem:[#allocation5 + $0x7f0] sm:$0xff]
    %v381 = vld [vmem:[#allocation5 + $0x7f8] sm:$0xff]
    %v382 = vld [vmem:[#allocation5 + $0x800] sm:$0xff]
    %v383 = vld [vmem:[#allocation5 + $0x808] sm:$0xff]
    %v384 = vld [vmem:[#allocation5 + $0x810] sm:$0xff]
    %v385 = vld [vmem:[#allocation5 + $0x818] sm:$0xff]
    %v386 = vld [vmem:[#allocation5 + $0x820] sm:$0xff]
    %v387 = vld [vmem:[#allocation5 + $0x828] sm:$0xff]
    %v388 = vld [vmem:[#allocation5 + $0x830] sm:$0xff]
    %v389 = vld [vmem:[#allocation5 + $0x838] sm:$0xff]
    %v390 = vld [vmem:[#allocation5 + $0x840] sm:$0xff]
    %v391 = vld [vmem:[#allocation5 + $0x848] sm:$0xff]
    %v392 = vld [vmem:[#allocation5 + $0x850] sm:$0xff]
    %v393 = vld [vmem:[#allocation5 + $0x858] sm:$0xff]
    %v394 = vld [vmem:[#allocation5 + $0x860] sm:$0xff]
    %v395 = vld [vmem:[#allocation5 + $0x868] sm:$0xff]
    %v396 = vld [vmem:[#allocation5 + $0x870] sm:$0xff]
    %v397 = vld [vmem:[#allocation5 + $0x878] sm:$0xff]
    %v398 = vld [vmem:[#allocation5 + $0x880] sm:$0xff]
    %v399 = vld [vmem:[#allocation5 + $0x888] sm:$0xff]
    %v400 = vld [vmem:[#allocation5 + $0x890] sm:$0xff]
    %v401 = vld [vmem:[#allocation5 + $0x898] sm:$0xff]
    %v402 = vld [vmem:[#allocation5 + $0x8a0] sm:$0xff]
    %v403 = vld [vmem:[#allocation5 + $0x8a8] sm:$0xff]
    %v404 = vld [vmem:[#allocation5 + $0x8b0] sm:$0xff]
    %v405 = vld [vmem:[#allocation5 + $0x8b8] sm:$0xff]
    %v406 = vld [vmem:[#allocation5 + $0x8c0] sm:$0xff]
    %v407 = vld [vmem:[#allocation5 + $0x8c8] sm:$0xff]
    %v408 = vld [vmem:[#allocation5 + $0x8d0] sm:$0xff]
    %v409 = vld [vmem:[#allocation5 + $0x8d8] sm:$0xff]
    %v410 = vld [vmem:[#allocation5 + $0x8e0] sm:$0xff]
    %v411 = vld [vmem:[#allocation5 + $0x8e8] sm:$0xff]
    %v412 = vld [vmem:[#allocation5 + $0x8f0] sm:$0xff]
    %v413 = vld [vmem:[#allocation5 + $0x8f8] sm:$0xff]
    %v414 = vld [vmem:[#allocation5 + $0x900] sm:$0xff]
    %v415 = vld [vmem:[#allocation5 + $0x908] sm:$0xff]
    %v416 = vld [vmem:[#allocation5 + $0x910] sm:$0xff]
    %v417 = vld [vmem:[#allocation5 + $0x918] sm:$0xff]
    %v418 = vld [vmem:[#allocation5 + $0x920] sm:$0xff]
    %v419 = vld [vmem:[#allocation5 + $0x928] sm:$0xff]
    %v420 = vld [vmem:[#allocation5 + $0x930] sm:$0xff]
    %v421 = vld [vmem:[#allocation5 + $0x938] sm:$0xff]
    %v422 = vld [vmem:[#allocation5 + $0x940] sm:$0xff]
    %v423 = vld [vmem:[#allocation5 + $0x948] sm:$0xff]
    %v424 = vld [vmem:[#allocation5 + $0x950] sm:$0xff]
    %v425 = vld [vmem:[#allocation5 + $0x958] sm:$0xff]
    %v426 = vld [vmem:[#allocation5 + $0x960] sm:$0xff]
    %v427 = vld [vmem:[#allocation5 + $0x968] sm:$0xff]
    %v428 = vld [vmem:[#allocation5 + $0x970] sm:$0xff]
    %v429 = vld [vmem:[#allocation5 + $0x978] sm:$0xff]
    %v430 = vld [vmem:[#allocation5 + $0x980] sm:$0xff]
    %v431 = vld [vmem:[#allocation5 + $0x988] sm:$0xff]
    %v432 = vld [vmem:[#allocation5 + $0x990] sm:$0xff]
    %v433 = vld [vmem:[#allocation5 + $0x998] sm:$0xff]
    %v434 = vld [vmem:[#allocation5 + $0x9a0] sm:$0xff]
    %v435 = vld [vmem:[#allocation5 + $0x9a8] sm:$0xff]
    %v436 = vld [vmem:[#allocation5 + $0x9b0] sm:$0xff]
    %v437 = vld [vmem:[#allocation5 + $0x9b8] sm:$0xff]
    %v438 = vld [vmem:[#allocation5 + $0x9c0] sm:$0xff]
    %v439 = vld [vmem:[#allocation5 + $0x9c8] sm:$0xff]
    %v440 = vld [vmem:[#allocation5 + $0x9d0] sm:$0xff]
    %v441 = vld [vmem:[#allocation5 + $0x9d8] sm:$0xff]
    %v442 = vld [vmem:[#allocation5 + $0x9e0] sm:$0xff]
    %v443 = vld [vmem:[#allocation5 + $0x9e8] sm:$0xff]
    %v444 = vld [vmem:[#allocation5 + $0x9f0] sm:$0xff]
    %v445 = vld [vmem:[#allocation5 + $0x9f8] sm:$0xff]
    %v446 = vld [vmem:[#allocation5 + $0xa00] sm:$0xff]
    %v447 = vld [vmem:[#allocation5 + $0xa08] sm:$0xff]
    %v448 = vld [vmem:[#allocation5 + $0xa10] sm:$0xff]
    %v449 = vld [vmem:[#allocation5 + $0xa18] sm:$0xff]
    %v450 = vld [vmem:[#allocation5 + $0xa20] sm:$0xff]
    %v451 = vld [vmem:[#allocation5 + $0xa28] sm:$0xff]
    %v452 = vld [vmem:[#allocation5 + $0xa30] sm:$0xff]
    %v453 = vld [vmem:[#allocation5 + $0xa38] sm:$0xff]
    %v454 = vld [vmem:[#allocation5 + $0xa40] sm:$0xff]
    %v455 = vld [vmem:[#allocation5 + $0xa48] sm:$0xff]
    %v456 = vld [vmem:[#allocation5 + $0xa50] sm:$0xff]
    %v457 = vld [vmem:[#allocation5 + $0xa58] sm:$0xff]
    %v458 = vld [vmem:[#allocation5 + $0xa60] sm:$0xff]
    %v459 = vld [vmem:[#allocation5 + $0xa68] sm:$0xff]
    %v460 = vld [vmem:[#allocation5 + $0xa70] sm:$0xff]
    %v461 = vld [vmem:[#allocation5 + $0xa78] sm:$0xff]
    %v462 = vld [vmem:[#allocation5 + $0xa80] sm:$0xff]
    %v463 = vld [vmem:[#allocation5 + $0xa88] sm:$0xff]
    %v464 = vld [vmem:[#allocation5 + $0xa90] sm:$0xff]
    %v465 = vld [vmem:[#allocation5 + $0xa98] sm:$0xff]
    %v466 = vld [vmem:[#allocation5 + $0xaa0] sm:$0xff]
    %v467 = vld [vmem:[#allocation5 + $0xaa8] sm:$0xff]
    %v468 = vld [vmem:[#allocation5 + $0xab0] sm:$0xff]
    %v469 = vld [vmem:[#allocation5 + $0xab8] sm:$0xff]
    %v470 = vld [vmem:[#allocation5 + $0xac0] sm:$0xff]
    %v471 = vld [vmem:[#allocation5 + $0xac8] sm:$0xff]
    %v472 = vld [vmem:[#allocation5 + $0xad0] sm:$0xff]
    %v473 = vld [vmem:[#allocation5 + $0xad8] sm:$0xff]
    %v474 = vld [vmem:[#allocation5 + $0xae0] sm:$0xff]
    %v475 = vld [vmem:[#allocation5 + $0xae8] sm:$0xff]
    %v476 = vld [vmem:[#allocation5 + $0xaf0] sm:$0xff]
    %v477 = vld [vmem:[#allocation5 + $0xaf8] sm:$0xff]
    %v478 = vld [vmem:[#allocation5 + $0xb00] sm:$0xff]
    %v479 = vld [vmem:[#allocation5 + $0xb08] sm:$0xff]
    %v480 = vld [vmem:[#allocation5 + $0xb10] sm:$0xff]
    %v481 = vld [vmem:[#allocation5 + $0xb18] sm:$0xff]
    %v482 = vld [vmem:[#allocation5 + $0xb20] sm:$0xff]
    %v483 = vld [vmem:[#allocation5 + $0xb28] sm:$0xff]
    %v484 = vld [vmem:[#allocation5 + $0xb30] sm:$0xff]
    %v485 = vld [vmem:[#allocation5 + $0xb38] sm:$0xff]
    %v486 = vld [vmem:[#allocation5 + $0xb40] sm:$0xff]
    %v487 = vld [vmem:[#allocation5 + $0xb48] sm:$0xff]
    %v488 = vld [vmem:[#allocation5 + $0xb50] sm:$0xff]
    %v489 = vld [vmem:[#allocation5 + $0xb58] sm:$0xff]
    %v490 = vld [vmem:[#allocation5 + $0xb60] sm:$0xff]
    %v491 = vld [vmem:[#allocation5 + $0xb68] sm:$0xff]
    %v492 = vld [vmem:[#allocation5 + $0xb70] sm:$0xff]
    %v493 = vld [vmem:[#allocation5 + $0xb78] sm:$0xff]
    %v494 = vld [vmem:[#allocation5 + $0xb80] sm:$0xff]
    %v495 = vld [vmem:[#allocation5 + $0xb88] sm:$0xff]
    %v496 = vld [vmem:[#allocation5 + $0xb90] sm:$0xff]
    %v497 = vld [vmem:[#allocation5 + $0xb98] sm:$0xff]
    %v498 = vld [vmem:[#allocation5 + $0xba0] sm:$0xff]
    %v499 = vld [vmem:[#allocation5 + $0xba8] sm:$0xff]
    %v500 = vld [vmem:[#allocation5 + $0xbb0] sm:$0xff]
    %v501 = vld [vmem:[#allocation5 + $0xbb8] sm:$0xff]
    %v502 = vld [vmem:[#allocation5 + $0xbc0] sm:$0xff]
    %v503 = vld [vmem:[#allocation5 + $0xbc8] sm:$0xff]
    %v504 = vld [vmem:[#allocation5 + $0xbd0] sm:$0xff]
    %v505 = vld [vmem:[#allocation5 + $0xbd8] sm:$0xff]
    %v506 = vld [vmem:[#allocation5 + $0xbe0] sm:$0xff]
    %v507 = vld [vmem:[#allocation5 + $0xbe8] sm:$0xff]
    %v508 = vld [vmem:[#allocation5 + $0xbf0] sm:$0xff]
    %v509 = vld [vmem:[#allocation5 + $0xbf8] sm:$0xff]
    %v510 = vld [vmem:[#allocation7] sm:$0xf]
    %v512 = vlaneseq
    %v513 = vshrl.u32 %v512, 7
    %v514 = vsub.s32 0, %v513
    %v515 = vrot.slane %v510, %v514
    %v516 = vlaneseq
    %v517 = vshrl.u32 %v516, 7
    %v518 = vsub.s32 1, %v517
    %v519 = vrot.slane %v510, %v518
    %v520 = vlaneseq
    %v521 = vshrl.u32 %v520, 7
    %v522 = vsub.s32 2, %v521
    %v523 = vrot.slane %v510, %v522
    %v524 = vlaneseq
    %v525 = vshrl.u32 %v524, 7
    %v526 = vsub.s32 3, %v525
    %v527 = vrot.slane %v510, %v526
    %532 = vmatprep.subr.mxu0 %v127
    %533 = vmatpush1.msra.mxu0 %v126
    %534 = vmatprep.subr.mxu0 %v131
    %535 = vmatpush1.msra.mxu0 %v130
    %536 = vmatprep.subr.mxu0 %v135
    %537 = vmatpush1.msra.mxu0 %v134
    %538 = vmatprep.subr.mxu0 %v139
    %539 = vmatpush1.msra.mxu0 %v138
    %540 = vmatprep.subr.mxu0 %v143
    %541 = vmatpush1.msra.mxu0 %v142
    %542 = vmatprep.subr.mxu0 %v147
    %543 = vmatpush1.msra.mxu0 %v146
    %544 = vmatprep.subr.mxu0 %v151
    %545 = vmatpush1.msra.mxu0 %v150
    %546 = vmatprep.subr.mxu0 %v155
    %547 = vmatpush1.msra.mxu0 %v154
    %548 = vmatprep.subr.mxu0 %v159
    %549 = vmatpush1.msra.mxu0 %v158
    %550 = vmatprep.subr.mxu0 %v163
    %551 = vmatpush1.msra.mxu0 %v162
    %552 = vmatprep.subr.mxu0 %v167
    %553 = vmatpush1.msra.mxu0 %v166
    %554 = vmatprep.subr.mxu0 %v171
    %555 = vmatpush1.msra.mxu0 %v170
    %556 = vmatprep.subr.mxu0 %v175
    %557 = vmatpush1.msra.mxu0 %v174
    %558 = vmatprep.subr.mxu0 %v179
    %559 = vmatpush1.msra.mxu0 %v178
    %560 = vmatprep.subr.mxu0 %v183
    %561 = vmatpush1.msra.mxu0 %v182
    %562 = vmatprep.subr.mxu0 %v187
    %563 = vmatpush1.msra.mxu0 %v186
    %564 = vmatprep.subr.mxu0 %v191
    %565 = vmatpush1.msra.mxu0 %v190
    %566 = vmatprep.subr.mxu0 %v195
    %567 = vmatpush1.msra.mxu0 %v194
    %568 = vmatprep.subr.mxu0 %v199
    %569 = vmatpush1.msra.mxu0 %v198
    %570 = vmatprep.subr.mxu0 %v203
    %571 = vmatpush1.msra.mxu0 %v202
    %572 = vmatprep.subr.mxu0 %v207
    %573 = vmatpush1.msra.mxu0 %v206
    %574 = vmatprep.subr.mxu0 %v211
    %575 = vmatpush1.msra.mxu0 %v210
    %576 = vmatprep.subr.mxu0 %v215
    %577 = vmatpush1.msra.mxu0 %v214
    %578 = vmatprep.subr.mxu0 %v219
    %579 = vmatpush1.msra.mxu0 %v218
    %580 = vmatprep.subr.mxu0 %v223
    %581 = vmatpush1.msra.mxu0 %v222
    %582 = vmatprep.subr.mxu0 %v227
    %583 = vmatpush1.msra.mxu0 %v226
    %584 = vmatprep.subr.mxu0 %v231
    %585 = vmatpush1.msra.mxu0 %v230
    %586 = vmatprep.subr.mxu0 %v235
    %587 = vmatpush1.msra.mxu0 %v234
    %588 = vmatprep.subr.mxu0 %v239
    %589 = vmatpush1.msra.mxu0 %v238
    %590 = vmatprep.subr.mxu0 %v243
    %591 = vmatpush1.msra.mxu0 %v242
    %592 = vmatprep.subr.mxu0 %v247
    %593 = vmatpush1.msra.mxu0 %v246
    %594 = vmatprep.subr.mxu0 %v251
    %595 = vmatpush1.msra.mxu0 %v250
    %596 = vmatprep.mubr.f32.mxu0 %v115
    %597 = vmatmul.mubr.f32.gmra.mrb[0].mxu0 %v114
    %v598 = vpop.f32.mrb[0].mxu0
    %v599 = vadd.f32 %v515, %v598
    %v600 = vpop.f32.mrb[0].mxu0
    %v601 = vadd.f32 %v519, %v600
    %602 = vmatprep.mubr.f32.mxu0 %v121
    %603 = vmatmul.mubr.f32.gmra.mrb[0].mxu0 %v120
    %v604 = vpop.f32.mrb[0].mxu0
    %v605 = vadd.f32 %v515, %v604
    %v606 = vpop.f32.mrb[0].mxu0
    %v607 = vadd.f32 %v519, %v606
    %608 = vdwg.mxu0
    %609 = vmatprep.subr.mxu0 %v255
    %610 = vmatpush1.msra.mxu0 %v254
    %611 = vmatprep.subr.mxu0 %v259
    %612 = vmatpush1.msra.mxu0 %v258
    %613 = vmatprep.subr.mxu0 %v263
    %614 = vmatpush1.msra.mxu0 %v262
    %615 = vmatprep.subr.mxu0 %v267
    %616 = vmatpush1.msra.mxu0 %v266
    %617 = vmatprep.subr.mxu0 %v271
    %618 = vmatpush1.msra.mxu0 %v270
    %619 = vmatprep.subr.mxu0 %v275
    %620 = vmatpush1.msra.mxu0 %v274
    %621 = vmatprep.subr.mxu0 %v279
    %622 = vmatpush1.msra.mxu0 %v278
    %623 = vmatprep.subr.mxu0 %v283
    %624 = vmatpush1.msra.mxu0 %v282
    %625 = vmatprep.subr.mxu0 %v287
    %626 = vmatpush1.msra.mxu0 %v286
    %627 = vmatprep.subr.mxu0 %v291
    %628 = vmatpush1.msra.mxu0 %v290
    %629 = vmatprep.subr.mxu0 %v295
    %630 = vmatpush1.msra.mxu0 %v294
    %631 = vmatprep.subr.mxu0 %v299
    %632 = vmatpush1.msra.mxu0 %v298
    %633 = vmatprep.subr.mxu0 %v303
    %634 = vmatpush1.msra.mxu0 %v302
    %635 = vmatprep.subr.mxu0 %v307
    %636 = vmatpush1.msra.mxu0 %v306
    %637 = vmatprep.subr.mxu0 %v311
    %638 = vmatpush1.msra.mxu0 %v310
    %639 = vmatprep.subr.mxu0 %v315
    %640 = vmatpush1.msra.mxu0 %v314
    %641 = vmatprep.subr.mxu0 %v319
    %642 = vmatpush1.msra.mxu0 %v318
    %643 = vmatprep.subr.mxu0 %v323
    %644 = vmatpush1.msra.mxu0 %v322
    %645 = vmatprep.subr.mxu0 %v327
    %646 = vmatpush1.msra.mxu0 %v326
    %647 = vmatprep.subr.mxu0 %v331
    %648 = vmatpush1.msra.mxu0 %v330
    %649 = vmatprep.subr.mxu0 %v335
    %650 = vmatpush1.msra.mxu0 %v334
    %651 = vmatprep.subr.mxu0 %v339
    %652 = vmatpush1.msra.mxu0 %v338
    %653 = vmatprep.subr.mxu0 %v343
    %654 = vmatpush1.msra.mxu0 %v342
    %655 = vmatprep.subr.mxu0 %v347
    %656 = vmatpush1.msra.mxu0 %v346
    %657 = vmatprep.subr.mxu0 %v351
    %658 = vmatpush1.msra.mxu0 %v350
    %659 = vmatprep.subr.mxu0 %v355
    %660 = vmatpush1.msra.mxu0 %v354
    %661 = vmatprep.subr.mxu0 %v359
    %662 = vmatpush1.msra.mxu0 %v358
    %663 = vmatprep.subr.mxu0 %v363
    %664 = vmatpush1.msra.mxu0 %v362
    %665 = vmatprep.subr.mxu0 %v367
    %666 = vmatpush1.msra.mxu0 %v366
    %667 = vmatprep.subr.mxu0 %v371
    %668 = vmatpush1.msra.mxu0 %v370
    %669 = vmatprep.subr.mxu0 %v375
    %670 = vmatpush1.msra.mxu0 %v374
    %671 = vmatprep.subr.mxu0 %v379
    %672 = vmatpush1.msra.mxu0 %v378
    %673 = vmatprep.mubr.f32.mxu0 %v117
    %674 = vmatmul.mubr.f32.gmra.mrb[0].mxu0 %v116
    %v675 = vpop.f32.mrb[0].mxu0
    %v676 = vadd.f32 %v599, %v675
    %v677 = vpop.f32.mrb[0].mxu0
    %v678 = vadd.f32 %v601, %v677
    %679 = vmatprep.mubr.f32.mxu0 %v123
    %680 = vmatmul.mubr.f32.gmra.mrb[0].mxu0 %v122
    %v681 = vpop.f32.mrb[0].mxu0
    %v682 = vadd.f32 %v605, %v681
    %v683 = vpop.f32.mrb[0].mxu0
    %v684 = vadd.f32 %v607, %v683
    %685 = vdwg.mxu0
    %686 = vmatprep.subr.mxu0 %v383
    %687 = vmatpush1.msra.mxu0 %v382
    %688 = vmatprep.subr.mxu0 %v387
    %689 = vmatpush1.msra.mxu0 %v386
    %690 = vmatprep.subr.mxu0 %v391
    %691 = vmatpush1.msra.mxu0 %v390
    %692 = vmatprep.subr.mxu0 %v395
    %693 = vmatpush1.msra.mxu0 %v394
    %694 = vmatprep.subr.mxu0 %v399
    %695 = vmatpush1.msra.mxu0 %v398
    %696 = vmatprep.subr.mxu0 %v403
    %697 = vmatpush1.msra.mxu0 %v402
    %698 = vmatprep.subr.mxu0 %v407
    %699 = vmatpush1.msra.mxu0 %v406
    %700 = vmatprep.subr.mxu0 %v411
    %701 = vmatpush1.msra.mxu0 %v410
    %702 = vmatprep.subr.mxu0 %v415
    %703 = vmatpush1.msra.mxu0 %v414
    %704 = vmatprep.subr.mxu0 %v419
    %705 = vmatpush1.msra.mxu0 %v418
    %706 = vmatprep.subr.mxu0 %v423
    %707 = vmatpush1.msra.mxu0 %v422
    %708 = vmatprep.subr.mxu0 %v427
    %709 = vmatpush1.msra.mxu0 %v426
    %710 = vmatprep.subr.mxu0 %v431
    %711 = vmatpush1.msra.mxu0 %v430
    %712 = vmatprep.subr.mxu0 %v435
    %713 = vmatpush1.msra.mxu0 %v434
    %714 = vmatprep.subr.mxu0 %v439
    %715 = vmatpush1.msra.mxu0 %v438
    %716 = vmatprep.subr.mxu0 %v443
    %717 = vmatpush1.msra.mxu0 %v442
    %718 = vmatprep.subr.mxu0 %v447
    %719 = vmatpush1.msra.mxu0 %v446
    %720 = vmatprep.subr.mxu0 %v451
    %721 = vmatpush1.msra.mxu0 %v450
    %722 = vmatprep.subr.mxu0 %v455
    %723 = vmatpush1.msra.mxu0 %v454
    %724 = vmatprep.subr.mxu0 %v459
    %725 = vmatpush1.msra.mxu0 %v458
    %726 = vmatprep.subr.mxu0 %v463
    %727 = vmatpush1.msra.mxu0 %v462
    %728 = vmatprep.subr.mxu0 %v467
    %729 = vmatpush1.msra.mxu0 %v466
    %730 = vmatprep.subr.mxu0 %v471
    %731 = vmatpush1.msra.mxu0 %v470
    %732 = vmatprep.subr.mxu0 %v475
    %733 = vmatpush1.msra.mxu0 %v474
    %734 = vmatprep.subr.mxu0 %v479
    %735 = vmatpush1.msra.mxu0 %v478
    %736 = vmatprep.subr.mxu0 %v483
    %737 = vmatpush1.msra.mxu0 %v482
    %738 = vmatprep.subr.mxu0 %v487
    %739 = vmatpush1.msra.mxu0 %v486
    %740 = vmatprep.subr.mxu0 %v491
    %741 = vmatpush1.msra.mxu0 %v490
    %742 = vmatprep.subr.mxu0 %v495
    %743 = vmatpush1.msra.mxu0 %v494
    %744 = vmatprep.subr.mxu0 %v499
    %745 = vmatpush1.msra.mxu0 %v498
    %746 = vmatprep.subr.mxu0 %v503
    %747 = vmatpush1.msra.mxu0 %v502
    %748 = vmatprep.subr.mxu0 %v507
    %749 = vmatpush1.msra.mxu0 %v506
    %750 = vmatprep.mubr.f32.mxu0 %v119
    %751 = vmatmul.mubr.f32.gmra.mrb[0].mxu0 %v118
    %v752 = vpop.f32.mrb[0].mxu0
    %v753 = vadd.f32 %v676, %v752
    %v754 = vpop.f32.mrb[0].mxu0
    %v755 = vadd.f32 %v678, %v754
    %756 = vmatprep.mubr.f32.mxu0 %v125
    %757 = vmatmul.mubr.f32.gmra.mrb[0].mxu0 %v124
    %v758 = vpop.f32.mrb[0].mxu0
    %v759 = vadd.f32 %v682, %v758
    %v760 = vpop.f32.mrb[0].mxu0
    %v761 = vadd.f32 %v684, %v760
    %762 = vdwg.mxu0
    %763 = vmatprep.subr.mxu0 %v129
    %764 = vmatpush1.msra.mxu0 %v128
    %765 = vmatprep.subr.mxu0 %v133
    %766 = vmatpush1.msra.mxu0 %v132
    %767 = vmatprep.subr.mxu0 %v137
    %768 = vmatpush1.msra.mxu0 %v136
    %769 = vmatprep.subr.mxu0 %v141
    %770 = vmatpush1.msra.mxu0 %v140
    %771 = vmatprep.subr.mxu0 %v145
    %772 = vmatpush1.msra.mxu0 %v144
    %773 = vmatprep.subr.mxu0 %v149
    %774 = vmatpush1.msra.mxu0 %v148
    %775 = vmatprep.subr.mxu0 %v153
    %776 = vmatpush1.msra.mxu0 %v152
    %777 = vmatprep.subr.mxu0 %v157
    %778 = vmatpush1.msra.mxu0 %v156
    %779 = vmatprep.subr.mxu0 %v161
    %780 = vmatpush1.msra.mxu0 %v160
    %781 = vmatprep.subr.mxu0 %v165
    %782 = vmatpush1.msra.mxu0 %v164
    %783 = vmatprep.subr.mxu0 %v169
    %784 = vmatpush1.msra.mxu0 %v168
    %785 = vmatprep.subr.mxu0 %v173
    %786 = vmatpush1.msra.mxu0 %v172
    %787 = vmatprep.subr.mxu0 %v177
    %788 = vmatpush1.msra.mxu0 %v176
    %789 = vmatprep.subr.mxu0 %v181
    %790 = vmatpush1.msra.mxu0 %v180
    %791 = vmatprep.subr.mxu0 %v185
    %792 = vmatpush1.msra.mxu0 %v184
    %793 = vmatprep.subr.mxu0 %v189
    %794 = vmatpush1.msra.mxu0 %v188
    %795 = vmatprep.subr.mxu0 %v193
    %796 = vmatpush1.msra.mxu0 %v192
    %797 = vmatprep.subr.mxu0 %v197
    %798 = vmatpush1.msra.mxu0 %v196
    %799 = vmatprep.subr.mxu0 %v201
    %800 = vmatpush1.msra.mxu0 %v200
    %801 = vmatprep.subr.mxu0 %v205
    %802 = vmatpush1.msra.mxu0 %v204
    %803 = vmatprep.subr.mxu0 %v209
    %804 = vmatpush1.msra.mxu0 %v208
    %805 = vmatprep.subr.mxu0 %v213
    %806 = vmatpush1.msra.mxu0 %v212
    %807 = vmatprep.subr.mxu0 %v217
    %808 = vmatpush1.msra.mxu0 %v216
    %809 = vmatprep.subr.mxu0 %v221
    %810 = vmatpush1.msra.mxu0 %v220
    %811 = vmatprep.subr.mxu0 %v225
    %812 = vmatpush1.msra.mxu0 %v224
    %813 = vmatprep.subr.mxu0 %v229
    %814 = vmatpush1.msra.mxu0 %v228
    %815 = vmatprep.subr.mxu0 %v233
    %816 = vmatpush1.msra.mxu0 %v232
    %817 = vmatprep.subr.mxu0 %v237
    %818 = vmatpush1.msra.mxu0 %v236
    %819 = vmatprep.subr.mxu0 %v241
    %820 = vmatpush1.msra.mxu0 %v240
    %821 = vmatprep.subr.mxu0 %v245
    %822 = vmatpush1.msra.mxu0 %v244
    %823 = vmatprep.subr.mxu0 %v249
    %824 = vmatpush1.msra.mxu0 %v248
    %825 = vmatprep.subr.mxu0 %v253
    %826 = vmatpush1.msra.mxu0 %v252
    %827 = vmatprep.mubr.f32.mxu0 %v115
    %828 = vmatmul.mubr.f32.gmra.mrb[0].mxu0 %v114
    %v829 = vpop.f32.mrb[0].mxu0
    %v830 = vadd.f32 %v523, %v829
    %v831 = vpop.f32.mrb[0].mxu0
    %v832 = vadd.f32 %v527, %v831
    %833 = vmatprep.mubr.f32.mxu0 %v121
    %834 = vmatmul.mubr.f32.gmra.mrb[0].mxu0 %v120
    %v835 = vpop.f32.mrb[0].mxu0
    %v836 = vadd.f32 %v523, %v835
    %v837 = vpop.f32.mrb[0].mxu0
    %v838 = vadd.f32 %v527, %v837
    %839 = vdwg.mxu0
    %840 = vmatprep.subr.mxu0 %v257
    %841 = vmatpush1.msra.mxu0 %v256
    %842 = vmatprep.subr.mxu0 %v261
    %843 = vmatpush1.msra.mxu0 %v260
    %844 = vmatprep.subr.mxu0 %v265
    %845 = vmatpush1.msra.mxu0 %v264
    %846 = vmatprep.subr.mxu0 %v269
    %847 = vmatpush1.msra.mxu0 %v268
    %848 = vmatprep.subr.mxu0 %v273
    %849 = vmatpush1.msra.mxu0 %v272
    %850 = vmatprep.subr.mxu0 %v277
    %851 = vmatpush1.msra.mxu0 %v276
    %852 = vmatprep.subr.mxu0 %v281
    %853 = vmatpush1.msra.mxu0 %v280
    %854 = vmatprep.subr.mxu0 %v285
    %855 = vmatpush1.msra.mxu0 %v284
    %856 = vmatprep.subr.mxu0 %v289
    %857 = vmatpush1.msra.mxu0 %v288
    %858 = vmatprep.subr.mxu0 %v293
    %859 = vmatpush1.msra.mxu0 %v292
    %860 = vmatprep.subr.mxu0 %v297
    %861 = vmatpush1.msra.mxu0 %v296
    %862 = vmatprep.subr.mxu0 %v301
    %863 = vmatpush1.msra.mxu0 %v300
    %864 = vmatprep.subr.mxu0 %v305
    %865 = vmatpush1.msra.mxu0 %v304
    %866 = vmatprep.subr.mxu0 %v309
    %867 = vmatpush1.msra.mxu0 %v308
    %868 = vmatprep.subr.mxu0 %v313
    %869 = vmatpush1.msra.mxu0 %v312
    %870 = vmatprep.subr.mxu0 %v317
    %871 = vmatpush1.msra.mxu0 %v316
    %872 = vmatprep.subr.mxu0 %v321
    %873 = vmatpush1.msra.mxu0 %v320
    %874 = vmatprep.subr.mxu0 %v325
    %875 = vmatpush1.msra.mxu0 %v324
    %876 = vmatprep.subr.mxu0 %v329
    %877 = vmatpush1.msra.mxu0 %v328
    %878 = vmatprep.subr.mxu0 %v333
    %879 = vmatpush1.msra.mxu0 %v332
    %880 = vmatprep.subr.mxu0 %v337
    %881 = vmatpush1.msra.mxu0 %v336
    %882 = vmatprep.subr.mxu0 %v341
    %883 = vmatpush1.msra.mxu0 %v340
    %884 = vmatprep.subr.mxu0 %v345
    %885 = vmatpush1.msra.mxu0 %v344
    %886 = vmatprep.subr.mxu0 %v349
    %887 = vmatpush1.msra.mxu0 %v348
    %888 = vmatprep.subr.mxu0 %v353
    %889 = vmatpush1.msra.mxu0 %v352
    %890 = vmatprep.subr.mxu0 %v357
    %891 = vmatpush1.msra.mxu0 %v356
    %892 = vmatprep.subr.mxu0 %v361
    %893 = vmatpush1.msra.mxu0 %v360
    %894 = vmatprep.subr.mxu0 %v365
    %895 = vmatpush1.msra.mxu0 %v364
    %896 = vmatprep.subr.mxu0 %v369
    %897 = vmatpush1.msra.mxu0 %v368
    %898 = vmatprep.subr.mxu0 %v373
    %899 = vmatpush1.msra.mxu0 %v372
    %900 = vmatprep.subr.mxu0 %v377
    %901 = vmatpush1.msra.mxu0 %v376
    %902 = vmatprep.subr.mxu0 %v381
    %903 = vmatpush1.msra.mxu0 %v380
    %904 = vmatprep.mubr.f32.mxu0 %v117
    %905 = vmatmul.mubr.f32.gmra.mrb[0].mxu0 %v116
    %v906 = vpop.f32.mrb[0].mxu0
    %v907 = vadd.f32 %v830, %v906
    %v908 = vpop.f32.mrb[0].mxu0
    %v909 = vadd.f32 %v832, %v908
    %910 = vmatprep.mubr.f32.mxu0 %v123
    %911 = vmatmul.mubr.f32.gmra.mrb[0].mxu0 %v122
    %v912 = vpop.f32.mrb[0].mxu0
    %v913 = vadd.f32 %v836, %v912
    %v914 = vpop.f32.mrb[0].mxu0
    %v915 = vadd.f32 %v838, %v914
    %916 = vdwg.mxu0
    %917 = vmatprep.subr.mxu0 %v385
    %918 = vmatpush1.msra.mxu0 %v384
    %919 = vmatprep.subr.mxu0 %v389
    %920 = vmatpush1.msra.mxu0 %v388
    %921 = vmatprep.subr.mxu0 %v393
    %922 = vmatpush1.msra.mxu0 %v392
    %923 = vmatprep.subr.mxu0 %v397
    %924 = vmatpush1.msra.mxu0 %v396
    %925 = vmatprep.subr.mxu0 %v401
    %926 = vmatpush1.msra.mxu0 %v400
    %927 = vmatprep.subr.mxu0 %v405
    %928 = vmatpush1.msra.mxu0 %v404
    %929 = vmatprep.subr.mxu0 %v409
    %930 = vmatpush1.msra.mxu0 %v408
    %931 = vmatprep.subr.mxu0 %v413
    %932 = vmatpush1.msra.mxu0 %v412
    %933 = vmatprep.subr.mxu0 %v417
    %934 = vmatpush1.msra.mxu0 %v416
    %935 = vmatprep.subr.mxu0 %v421
    %936 = vmatpush1.msra.mxu0 %v420
    %937 = vmatprep.subr.mxu0 %v425
    %938 = vmatpush1.msra.mxu0 %v424
    %939 = vmatprep.subr.mxu0 %v429
    %940 = vmatpush1.msra.mxu0 %v428
    %941 = vmatprep.subr.mxu0 %v433
    %942 = vmatpush1.msra.mxu0 %v432
    %943 = vmatprep.subr.mxu0 %v437
    %944 = vmatpush1.msra.mxu0 %v436
    %945 = vmatprep.subr.mxu0 %v441
    %946 = vmatpush1.msra.mxu0 %v440
    %947 = vmatprep.subr.mxu0 %v445
    %948 = vmatpush1.msra.mxu0 %v444
    %949 = vmatprep.subr.mxu0 %v449
    %950 = vmatpush1.msra.mxu0 %v448
    %951 = vmatprep.subr.mxu0 %v453
    %952 = vmatpush1.msra.mxu0 %v452
    %953 = vmatprep.subr.mxu0 %v457
    %954 = vmatpush1.msra.mxu0 %v456
    %955 = vmatprep.subr.mxu0 %v461
    %956 = vmatpush1.msra.mxu0 %v460
    %957 = vmatprep.subr.mxu0 %v465
    %958 = vmatpush1.msra.mxu0 %v464
    %959 = vmatprep.subr.mxu0 %v469
    %960 = vmatpush1.msra.mxu0 %v468
    %961 = vmatprep.subr.mxu0 %v473
    %962 = vmatpush1.msra.mxu0 %v472
    %963 = vmatprep.subr.mxu0 %v477
    %964 = vmatpush1.msra.mxu0 %v476
    %965 = vmatprep.subr.mxu0 %v481
    %966 = vmatpush1.msra.mxu0 %v480
    %967 = vmatprep.subr.mxu0 %v485
    %968 = vmatpush1.msra.mxu0 %v484
    %969 = vmatprep.subr.mxu0 %v489
    %970 = vmatpush1.msra.mxu0 %v488
    %971 = vmatprep.subr.mxu0 %v493
    %972 = vmatpush1.msra.mxu0 %v492
    %973 = vmatprep.subr.mxu0 %v497
    %974 = vmatpush1.msra.mxu0 %v496
    %975 = vmatprep.subr.mxu0 %v501
    %976 = vmatpush1.msra.mxu0 %v500
    %977 = vmatprep.subr.mxu0 %v505
    %978 = vmatpush1.msra.mxu0 %v504
    %979 = vmatprep.subr.mxu0 %v509
    %980 = vmatpush1.msra.mxu0 %v508
    %981 = vmatprep.mubr.f32.mxu0 %v119
    %982 = vmatmul.mubr.f32.gmra.mrb[0].mxu0 %v118
    %v983 = vpop.f32.mrb[0].mxu0
    %v984 = vadd.f32 %v907, %v983
    %v985 = vpop.f32.mrb[0].mxu0
    %v986 = vadd.f32 %v909, %v985
    %987 = vmatprep.mubr.f32.mxu0 %v125
    %988 = vmatmul.mubr.f32.gmra.mrb[0].mxu0 %v124
    %v989 = vpop.f32.mrb[0].mxu0
    %v990 = vadd.f32 %v913, %v989
    %v991 = vpop.f32.mrb[0].mxu0
    %v992 = vadd.f32 %v915, %v991
    %993 = vdwg.mxu0
    %v994 = vmul.f32 %v753, 0.5
    %v995 = vmul.f32 %v755, 0.5
    %v996 = vmul.f32 %v984, 0.5
    %v997 = vmul.f32 %v986, 0.5
    %v998 = vmul.f32 %v759, 0.5
    %v999 = vmul.f32 %v761, 0.5
    %v1000 = vmul.f32 %v990, 0.5
    %v1001 = vmul.f32 %v992, 0.5
    %v1002 = vmul.f32 %v753, 0.70710677
    %v1003 = vmul.f32 %v755, 0.70710677
    %v1004 = vmul.f32 %v984, 0.70710677
    %v1005 = vmul.f32 %v986, 0.70710677
    %v1006 = vmul.f32 %v759, 0.70710677
    %v1007 = vmul.f32 %v761, 0.70710677
    %v1008 = vmul.f32 %v990, 0.70710677
    %v1009 = vmul.f32 %v992, 0.70710677
    %v1010 = verf.f32.pop %v1002
    %v1011 = verf.f32.pop %v1003
    %v1012 = verf.f32.pop %v1004
    %v1013 = verf.f32.pop %v1005
    %v1014 = verf.f32.pop %v1006
    %v1015 = verf.f32.pop %v1007
    %v1016 = verf.f32.pop %v1008
    %v1017 = verf.f32.pop %v1009
    %v1018 = vadd.f32 %v1010, 1.0
    %v1019 = vadd.f32 %v1011, 1.0
    %v1020 = vadd.f32 %v1012, 1.0
    %v1021 = vadd.f32 %v1013, 1.0
    %v1022 = vadd.f32 %v1014, 1.0
    %v1023 = vadd.f32 %v1015, 1.0
    %v1024 = vadd.f32 %v1016, 1.0
    %v1025 = vadd.f32 %v1017, 1.0
    %v1026 = vmul.f32 %v994, %v1018
    %v1027 = vmul.f32 %v995, %v1019
    %v1028 = vmul.f32 %v996, %v1020
    %v1029 = vmul.f32 %v997, %v1021
    %v1030 = vmul.f32 %v998, %v1022
    %v1031 = vmul.f32 %v999, %v1023
    %v1032 = vmul.f32 %v1000, %v1024
    %v1033 = vmul.f32 %v1001, %v1025
    %v1034 = vadd.f32 %v1026, %v1027
    %v1035 = vadd.f32 %v1034, %v1028
    %v1036 = vadd.f32 %v1035, %v1029
    %1037 = vadd.xlane.f32.xlu0 %v1036
    %v1038 = vpop.xlane.xlu0 %1037
    %v1039 = vadd.f32 %v1030, %v1031
    %v1040 = vadd.f32 %v1039, %v1032
    %v1041 = vadd.f32 %v1040, %v1033
    %1042 = vadd.xlane.f32.xlu0 %v1041
    %v1043 = vpop.xlane.xlu0 %1042
    %v1044 = vrcp.pop 512.0
    %v1045 = vmul.f32 %v1038, %v1044
    %v1046 = vmul.f32 %v1043, %v1044
    %v1047 = vmul.f32 %v1026, %v1026
    %v1048 = vmul.f32 %v1027, %v1027
    %v1049 = vmul.f32 %v1028, %v1028
    %v1050 = vmul.f32 %v1029, %v1029
    %v1051 = vmul.f32 %v1030, %v1030
    %v1052 = vmul.f32 %v1031, %v1031
    %v1053 = vmul.f32 %v1032, %v1032
    %v1054 = vmul.f32 %v1033, %v1033
    %v1055 = vadd.f32 %v1047, %v1048
    %v1056 = vadd.f32 %v1055, %v1049
    %v1057 = vadd.f32 %v1056, %v1050
    %1058 = vadd.xlane.f32.xlu0 %v1057
    %v1059 = vpop.xlane.xlu0 %1058
    %v1060 = vadd.f32 %v1051, %v1052
    %v1061 = vadd.f32 %v1060, %v1053
    %v1062 = vadd.f32 %v1061, %v1054
    %1063 = vadd.xlane.f32.xlu0 %v1062
    %v1064 = vpop.xlane.xlu0 %1063
    %v1065 = vmul.f32 %v1059, %v1044
    %v1066 = vmul.f32 %v1064, %v1044
    %v1067 = vmul.f32 %v1045, %v1045
    %v1068 = vmul.f32 %v1046, %v1046
    %v1069 = vsub.f32 %v1065, %v1067
    %v1070 = vsub.f32 %v1066, %v1068
    %v1071 = vsub.f32 %v1026, %v1045
    %v1072 = vsub.f32 %v1027, %v1045
    %v1073 = vsub.f32 %v1028, %v1045
    %v1074 = vsub.f32 %v1029, %v1045
    %v1075 = vsub.f32 %v1030, %v1046
    %v1076 = vsub.f32 %v1031, %v1046
    %v1077 = vsub.f32 %v1032, %v1046
    %v1078 = vsub.f32 %v1033, %v1046
    %v1079 = vadd.f32 %v1069, 1e-12
    %v1080 = vadd.f32 %v1070, 1e-12
    %v1081 = vrsqrt.pop %v1079
    %v1082 = vrsqrt.pop %v1080
    %v1083 = vmul.f32 %v1071, %v1081
    %v1084 = vmul.f32 %v1072, %v1081
    %v1085 = vmul.f32 %v1073, %v1081
    %v1086 = vmul.f32 %v1074, %v1081
    %v1087 = vmul.f32 %v1075, %v1082
    %v1088 = vmul.f32 %v1076, %v1082
    %v1089 = vmul.f32 %v1077, %v1082
    %v1090 = vmul.f32 %v1078, %v1082
    %v1091 = vld [vmem:[#allocation8] sm:$0xf]
    %v1093 = vlaneseq
    %v1094 = vshrl.u32 %v1093, 7
    %v1095 = vsub.s32 0, %v1094
    %v1096 = vrot.slane %v1091, %v1095
    %v1097 = vlaneseq
    %v1098 = vshrl.u32 %v1097, 7
    %v1099 = vsub.s32 1, %v1098
    %v1100 = vrot.slane %v1091, %v1099
    %v1101 = vlaneseq
    %v1102 = vshrl.u32 %v1101, 7
    %v1103 = vsub.s32 2, %v1102
    %v1104 = vrot.slane %v1091, %v1103
    %v1105 = vlaneseq
    %v1106 = vshrl.u32 %v1105, 7
    %v1107 = vsub.s32 3, %v1106
    %v1108 = vrot.slane %v1091, %v1107
    %v1113 = vmul.f32 %v1083, %v1096
    %v1114 = vmul.f32 %v1084, %v1100
    %v1115 = vmul.f32 %v1085, %v1104
    %v1116 = vmul.f32 %v1086, %v1108
    %v1117 = vmul.f32 %v1087, %v1096
    %v1118 = vmul.f32 %v1088, %v1100
    %v1119 = vmul.f32 %v1089, %v1104
    %v1120 = vmul.f32 %v1090, %v1108
    %v1121 = vld [vmem:[#allocation10] sm:$0xf]
    %v1123 = vlaneseq
    %v1124 = vshrl.u32 %v1123, 7
    %v1125 = vsub.s32 0, %v1124
    %v1126 = vrot.slane %v1121, %v1125
    %v1127 = vlaneseq
    %v1128 = vshrl.u32 %v1127, 7
    %v1129 = vsub.s32 1, %v1128
    %v1130 = vrot.slane %v1121, %v1129
    %v1131 = vlaneseq
    %v1132 = vshrl.u32 %v1131, 7
    %v1133 = vsub.s32 2, %v1132
    %v1134 = vrot.slane %v1121, %v1133
    %v1135 = vlaneseq
    %v1136 = vshrl.u32 %v1135, 7
    %v1137 = vsub.s32 3, %v1136
    %v1138 = vrot.slane %v1121, %v1137
    %v1143 = vadd.f32 %v1113, %v1126
    %v1144 = vadd.f32 %v1114, %v1130
    %v1145 = vadd.f32 %v1115, %v1134
    %v1146 = vadd.f32 %v1116, %v1138
    %v1147 = vadd.f32 %v1117, %v1126
    %v1148 = vadd.f32 %v1118, %v1130
    %v1149 = vadd.f32 %v1119, %v1134
    %v1150 = vadd.f32 %v1120, %v1138
    %v1151 = vld [vmem:[#allocation11] sm:$0xff]
    %v1152 = vld [vmem:[#allocation11 + $0x8] sm:$0xff]
    %v1153 = vld [vmem:[#allocation11 + $0x10] sm:$0xff]
    %v1154 = vld [vmem:[#allocation11 + $0x18] sm:$0xff]
    %v1155 = vld [vmem:[#allocation11 + $0x20] sm:$0xff]
    %v1156 = vld [vmem:[#allocation11 + $0x28] sm:$0xff]
    %v1157 = vld [vmem:[#allocation11 + $0x30] sm:$0xff]
    %v1158 = vld [vmem:[#allocation11 + $0x38] sm:$0xff]
    %v1159 = vld [vmem:[#allocation11 + $0x40] sm:$0xff]
    %v1160 = vld [vmem:[#allocation11 + $0x48] sm:$0xff]
    %v1161 = vld [vmem:[#allocation11 + $0x50] sm:$0xff]
    %v1162 = vld [vmem:[#allocation11 + $0x58] sm:$0xff]
    %v1163 = vld [vmem:[#allocation11 + $0x60] sm:$0xff]
    %v1164 = vld [vmem:[#allocation11 + $0x68] sm:$0xff]
    %v1165 = vld [vmem:[#allocation11 + $0x70] sm:$0xff]
    %v1166 = vld [vmem:[#allocation11 + $0x78] sm:$0xff]
    %v1167 = vld [vmem:[#allocation11 + $0x80] sm:$0xff]
    %v1168 = vld [vmem:[#allocation11 + $0x88] sm:$0xff]
    %v1169 = vld [vmem:[#allocation11 + $0x90] sm:$0xff]
    %v1170 = vld [vmem:[#allocation11 + $0x98] sm:$0xff]
    %v1171 = vld [vmem:[#allocation11 + $0xa0] sm:$0xff]
    %v1172 = vld [vmem:[#allocation11 + $0xa8] sm:$0xff]
    %v1173 = vld [vmem:[#allocation11 + $0xb0] sm:$0xff]
    %v1174 = vld [vmem:[#allocation11 + $0xb8] sm:$0xff]
    %v1175 = vld [vmem:[#allocation11 + $0xc0] sm:$0xff]
    %v1176 = vld [vmem:[#allocation11 + $0xc8] sm:$0xff]
    %v1177 = vld [vmem:[#allocation11 + $0xd0] sm:$0xff]
    %v1178 = vld [vmem:[#allocation11 + $0xd8] sm:$0xff]
    %v1179 = vld [vmem:[#allocation11 + $0xe0] sm:$0xff]
    %v1180 = vld [vmem:[#allocation11 + $0xe8] sm:$0xff]
    %v1181 = vld [vmem:[#allocation11 + $0xf0] sm:$0xff]
    %v1182 = vld [vmem:[#allocation11 + $0xf8] sm:$0xff]
    %v1183 = vld [vmem:[#allocation11 + $0x100] sm:$0xff]
    %v1184 = vld [vmem:[#allocation11 + $0x108] sm:$0xff]
    %v1185 = vld [vmem:[#allocation11 + $0x110] sm:$0xff]
    %v1186 = vld [vmem:[#allocation11 + $0x118] sm:$0xff]
    %v1187 = vld [vmem:[#allocation11 + $0x120] sm:$0xff]
    %v1188 = vld [vmem:[#allocation11 + $0x128] sm:$0xff]
    %v1189 = vld [vmem:[#allocation11 + $0x130] sm:$0xff]
    %v1190 = vld [vmem:[#allocation11 + $0x138] sm:$0xff]
    %v1191 = vld [vmem:[#allocation11 + $0x140] sm:$0xff]
    %v1192 = vld [vmem:[#allocation11 + $0x148] sm:$0xff]
    %v1193 = vld [vmem:[#allocation11 + $0x150] sm:$0xff]
    %v1194 = vld [vmem:[#allocation11 + $0x158] sm:$0xff]
    %v1195 = vld [vmem:[#allocation11 + $0x160] sm:$0xff]
    %v1196 = vld [vmem:[#allocation11 + $0x168] sm:$0xff]
    %v1197 = vld [vmem:[#allocation11 + $0x170] sm:$0xff]
    %v1198 = vld [vmem:[#allocation11 + $0x178] sm:$0xff]
    %v1199 = vld [vmem:[#allocation11 + $0x180] sm:$0xff]
    %v1200 = vld [vmem:[#allocation11 + $0x188] sm:$0xff]
    %v1201 = vld [vmem:[#allocation11 + $0x190] sm:$0xff]
    %v1202 = vld [vmem:[#allocation11 + $0x198] sm:$0xff]
    %v1203 = vld [vmem:[#allocation11 + $0x1a0] sm:$0xff]
    %v1204 = vld [vmem:[#allocation11 + $0x1a8] sm:$0xff]
    %v1205 = vld [vmem:[#allocation11 + $0x1b0] sm:$0xff]
    %v1206 = vld [vmem:[#allocation11 + $0x1b8] sm:$0xff]
    %v1207 = vld [vmem:[#allocation11 + $0x1c0] sm:$0xff]
    %v1208 = vld [vmem:[#allocation11 + $0x1c8] sm:$0xff]
    %v1209 = vld [vmem:[#allocation11 + $0x1d0] sm:$0xff]
    %v1210 = vld [vmem:[#allocation11 + $0x1d8] sm:$0xff]
    %v1211 = vld [vmem:[#allocation11 + $0x1e0] sm:$0xff]
    %v1212 = vld [vmem:[#allocation11 + $0x1e8] sm:$0xff]
    %v1213 = vld [vmem:[#allocation11 + $0x1f0] sm:$0xff]
    %v1214 = vld [vmem:[#allocation11 + $0x1f8] sm:$0xff]
    %v1215 = vld [vmem:[#allocation13] sm:$0x1]
    %v1217 = vlaneseq
    %v1218 = vshrl.u32 %v1217, 7
    %v1219 = vsub.s32 0, %v1218
    %v1220 = vrot.slane %v1215, %v1219
    %1222 = vmatprep.subr.mxu0 0.0
    %1223 = vmatpush1.msra.mxu0 %v1151
    %1224 = vmatprep.subr.mxu0 0.0
    %1225 = vmatpush1.msra.mxu0 %v1152
    %1226 = vmatprep.subr.mxu0 0.0
    %1227 = vmatpush1.msra.mxu0 %v1153
    %1228 = vmatprep.subr.mxu0 0.0
    %1229 = vmatpush1.msra.mxu0 %v1154
    %1230 = vmatprep.subr.mxu0 0.0
    %1231 = vmatpush1.msra.mxu0 %v1155
    %1232 = vmatprep.subr.mxu0 0.0
    %1233 = vmatpush1.msra.mxu0 %v1156
    %1234 = vmatprep.subr.mxu0 0.0
    %1235 = vmatpush1.msra.mxu0 %v1157
    %1236 = vmatprep.subr.mxu0 0.0
    %1237 = vmatpush1.msra.mxu0 %v1158
    %1238 = vmatprep.subr.mxu0 0.0
    %1239 = vmatpush1.msra.mxu0 %v1159
    %1240 = vmatprep.subr.mxu0 0.0
    %1241 = vmatpush1.msra.mxu0 %v1160
    %1242 = vmatprep.subr.mxu0 0.0
    %1243 = vmatpush1.msra.mxu0 %v1161
    %1244 = vmatprep.subr.mxu0 0.0
    %1245 = vmatpush1.msra.mxu0 %v1162
    %1246 = vmatprep.subr.mxu0 0.0
    %1247 = vmatpush1.msra.mxu0 %v1163
    %1248 = vmatprep.subr.mxu0 0.0
    %1249 = vmatpush1.msra.mxu0 %v1164
    %1250 = vmatprep.subr.mxu0 0.0
    %1251 = vmatpush1.msra.mxu0 %v1165
    %1252 = vmatprep.subr.mxu0 0.0
    %1253 = vmatpush1.msra.mxu0 %v1166
    %1254 = vmatprep.subr.mxu0 0.0
    %1255 = vmatpush1.msra.mxu0 %v1167
    %1256 = vmatprep.subr.mxu0 0.0
    %1257 = vmatpush1.msra.mxu0 %v1168
    %1258 = vmatprep.subr.mxu0 0.0
    %1259 = vmatpush1.msra.mxu0 %v1169
    %1260 = vmatprep.subr.mxu0 0.0
    %1261 = vmatpush1.msra.mxu0 %v1170
    %1262 = vmatprep.subr.mxu0 0.0
    %1263 = vmatpush1.msra.mxu0 %v1171
    %1264 = vmatprep.subr.mxu0 0.0
    %1265 = vmatpush1.msra.mxu0 %v1172
    %1266 = vmatprep.subr.mxu0 0.0
    %1267 = vmatpush1.msra.mxu0 %v1173
    %1268 = vmatprep.subr.mxu0 0.0
    %1269 = vmatpush1.msra.mxu0 %v1174
    %1270 = vmatprep.subr.mxu0 0.0
    %1271 = vmatpush1.msra.mxu0 %v1175
    %1272 = vmatprep.subr.mxu0 0.0
    %1273 = vmatpush1.msra.mxu0 %v1176
    %1274 = vmatprep.subr.mxu0 0.0
    %1275 = vmatpush1.msra.mxu0 %v1177
    %1276 = vmatprep.subr.mxu0 0.0
    %1277 = vmatpush1.msra.mxu0 %v1178
    %1278 = vmatprep.subr.mxu0 0.0
    %1279 = vmatpush1.msra.mxu0 %v1179
    %1280 = vmatprep.subr.mxu0 0.0
    %1281 = vmatpush1.msra.mxu0 %v1180
    %1282 = vmatprep.subr.mxu0 0.0
    %1283 = vmatpush1.msra.mxu0 %v1181
    %1284 = vmatprep.subr.mxu0 0.0
    %1285 = vmatpush1.msra.mxu0 %v1182
    %1286 = vmatprep.mubr.f32.mxu0 %v1144
    %1287 = vmatmul.mubr.f32.gmra.mrb[0].mxu0 %v1143
    %v1288 = vpop.f32.mrb[0].mxu0
    %v1289 = vadd.f32 %v1220, %v1288
    %v1290 = vpop.f32.mrb[0].mxu0
    %1291 = vmatprep.mubr.f32.mxu0 %v1148
    %1292 = vmatmul.mubr.f32.gmra.mrb[0].mxu0 %v1147
    %v1293 = vpop.f32.mrb[0].mxu0
    %v1294 = vadd.f32 %v1220, %v1293
    %v1295 = vpop.f32.mrb[0].mxu0
    %1296 = vdwg.mxu0
    %1297 = vmatprep.subr.mxu0 0.0
    %1298 = vmatpush1.msra.mxu0 %v1183
    %1299 = vmatprep.subr.mxu0 0.0
    %1300 = vmatpush1.msra.mxu0 %v1184
    %1301 = vmatprep.subr.mxu0 0.0
    %1302 = vmatpush1.msra.mxu0 %v1185
    %1303 = vmatprep.subr.mxu0 0.0
    %1304 = vmatpush1.msra.mxu0 %v1186
    %1305 = vmatprep.subr.mxu0 0.0
    %1306 = vmatpush1.msra.mxu0 %v1187
    %1307 = vmatprep.subr.mxu0 0.0
    %1308 = vmatpush1.msra.mxu0 %v1188
    %1309 = vmatprep.subr.mxu0 0.0
    %1310 = vmatpush1.msra.mxu0 %v1189
    %1311 = vmatprep.subr.mxu0 0.0
    %1312 = vmatpush1.msra.mxu0 %v1190
    %1313 = vmatprep.subr.mxu0 0.0
    %1314 = vmatpush1.msra.mxu0 %v1191
    %1315 = vmatprep.subr.mxu0 0.0
    %1316 = vmatpush1.msra.mxu0 %v1192
    %1317 = vmatprep.subr.mxu0 0.0
    %1318 = vmatpush1.msra.mxu0 %v1193
    %1319 = vmatprep.subr.mxu0 0.0
    %1320 = vmatpush1.msra.mxu0 %v1194
    %1321 = vmatprep.subr.mxu0 0.0
    %1322 = vmatpush1.msra.mxu0 %v1195
    %1323 = vmatprep.subr.mxu0 0.0
    %1324 = vmatpush1.msra.mxu0 %v1196
    %1325 = vmatprep.subr.mxu0 0.0
    %1326 = vmatpush1.msra.mxu0 %v1197
    %1327 = vmatprep.subr.mxu0 0.0
    %1328 = vmatpush1.msra.mxu0 %v1198
    %1329 = vmatprep.subr.mxu0 0.0
    %1330 = vmatpush1.msra.mxu0 %v1199
    %1331 = vmatprep.subr.mxu0 0.0
    %1332 = vmatpush1.msra.mxu0 %v1200
    %1333 = vmatprep.subr.mxu0 0.0
    %1334 = vmatpush1.msra.mxu0 %v1201
    %1335 = vmatprep.subr.mxu0 0.0
    %1336 = vmatpush1.msra.mxu0 %v1202
    %1337 = vmatprep.subr.mxu0 0.0
    %1338 = vmatpush1.msra.mxu0 %v1203
    %1339 = vmatprep.subr.mxu0 0.0
    %1340 = vmatpush1.msra.mxu0 %v1204
    %1341 = vmatprep.subr.mxu0 0.0
    %1342 = vmatpush1.msra.mxu0 %v1205
    %1343 = vmatprep.subr.mxu0 0.0
    %1344 = vmatpush1.msra.mxu0 %v1206
    %1345 = vmatprep.subr.mxu0 0.0
    %1346 = vmatpush1.msra.mxu0 %v1207
    %1347 = vmatprep.subr.mxu0 0.0
    %1348 = vmatpush1.msra.mxu0 %v1208
    %1349 = vmatprep.subr.mxu0 0.0
    %1350 = vmatpush1.msra.mxu0 %v1209
    %1351 = vmatprep.subr.mxu0 0.0
    %1352 = vmatpush1.msra.mxu0 %v1210
    %1353 = vmatprep.subr.mxu0 0.0
    %1354 = vmatpush1.msra.mxu0 %v1211
    %1355 = vmatprep.subr.mxu0 0.0
    %1356 = vmatpush1.msra.mxu0 %v1212
    %1357 = vmatprep.subr.mxu0 0.0
    %1358 = vmatpush1.msra.mxu0 %v1213
    %1359 = vmatprep.subr.mxu0 0.0
    %1360 = vmatpush1.msra.mxu0 %v1214
    %1361 = vmatprep.mubr.f32.mxu0 %v1146
    %1362 = vmatmul.mubr.f32.gmra.mrb[0].mxu0 %v1145
    %v1363 = vpop.f32.mrb[0].mxu0
    %v1364 = vadd.f32 %v1289, %v1363
    %v1365 = vpop.f32.mrb[0].mxu0
    %1366 = vmatprep.mubr.f32.mxu0 %v1150
    %1367 = vmatmul.mubr.f32.gmra.mrb[0].mxu0 %v1149
    %v1368 = vpop.f32.mrb[0].mxu0
    %v1369 = vadd.f32 %v1294, %v1368
    %v1370 = vpop.f32.mrb[0].mxu0
    %1371 = vdwg.mxu0
    %v1372 = vxor.u32 %v1364, 2147483648
    %v1373 = vxor.u32 %v1369, 2147483648
    %v1374 = vmul.f32 %v1372, 1.442695
    %v1375 = vpow.pop %v1374
    %v1376 = vmul.f32 %v1373, 1.442695
    %v1377 = vpow.pop %v1376
    %v1378 = vadd.f32 %v1375, 1.0
    %v1379 = vadd.f32 %v1377, 1.0
    %v1380 = vrcp.pop %v1378
    %v1381 = vmul.f32 1.0, %v1380
    %v1382 = vrcp.pop %v1379
    %v1383 = vmul.f32 1.0, %v1382
    %1384 = vst [vmem:[#allocation14] sm:$0xff] %v1381
    %1385 = vst [vmem:[#allocation14 + $0x8] sm:$0xff] %v1383
    // Predicated region
    $region58: #{tpu_custom_call.1} parent=1 // pred_check
      _
    $region59: #{tpu_custom_call.1} parent=1 // pred_check_branch
      %1387 = sbr.rel (0) target = $region61
    $region60: #{tpu_custom_call.1} parent=1 // pred_region
      %s1389 = ssub.s32 256, 256
      %1390 = vsyncadd [#allocation4], %s1389
      %s1391 = sshll.u32 [#allocation14], 4
      %s1392 = int_to_ptr.vmem [resolvable:$true] %s1391
      %1397 = dma.vmem_to_hbm [thread:$0]  %s1392, 256, %s7, [#allocation4], 128, 128, 8
    $region61: #{tpu_custom_call.1} parent=1 // pred_fallthru
      _
    // Predicated region
    $region62: #{tpu_custom_call.1} parent=1 // pred_check
      _
    $region63: #{tpu_custom_call.1} parent=1 // pred_check_branch
      %1399 = sbr.rel (0) target = $region65
    $region64: #{tpu_custom_call.1} parent=1 // pred_region
      %1400 = dma.done [#allocation4], 256
    $region65: #{tpu_custom_call.1} parent=1 // pred_fallthru
      _
    %1401 = vsyncpa [#allocation3], 1
    %1402 = vsyncpa [#allocation6], 1
    %1403 = vsyncpa [#allocation9], 1
    %1404 = vsyncpa [#allocation12], 1
    %1405 = vsyncpa [#allocation4], 1

</llo_original>
